<compile_context>
chip_gen: v6e
topology: v6e:2x2x1
jax: 0.10.0
libtpu: 0.0.40
codegen_flags: <defaults>
</compile_context>

<pallas_src>
import functools

import jax
import jax.numpy as jnp
from jax.experimental import pallas as pl
from jax.experimental.pallas import tpu as pltpu

LANE = 128
SUBLANE = 8
MIB = 1 << 20


def round_up(x, m):
    return (x + m - 1) // m * m


# --------------------------------------------------------------------------- #
# Row-tiled  (N, K) @ (K, M) + b   [optional row-mask, optional sigmoid]
# Only used for the final Linear+Sigmoid (the per-layer input projections are
# fused into the recurrence kernel below).
# --------------------------------------------------------------------------- #
def _linear_kernel(x_ref, w_ref, b_ref, o_ref, *, apply_sigmoid):
    x = x_ref[...].astype(w_ref.dtype)
    acc = jnp.dot(x, w_ref[...], preferred_element_type=jnp.float32) + b_ref[...]
    if apply_sigmoid:
        acc = jax.nn.sigmoid(acc)
    o_ref[...] = acc.astype(o_ref.dtype)


def _linear_kernel_masked(x_ref, m_ref, w_ref, b_ref, o_ref, *, apply_sigmoid):
    x = (x_ref[...].astype(jnp.float32) * m_ref[...]).astype(w_ref.dtype)
    acc = jnp.dot(x, w_ref[...], preferred_element_type=jnp.float32) + b_ref[...]
    if apply_sigmoid:
        acc = jax.nn.sigmoid(acc)
    o_ref[...] = acc.astype(o_ref.dtype)


def linear_rows(x, w, b, *, mask=None, apply_sigmoid=False, tile_rows=512):
    """x: (N, K), w: (K, M); K, M lane-aligned. Returns (N, M) float32."""
    N, K = x.shape
    M = w.shape[1]
    TN = min(tile_rows, round_up(N, SUBLANE))
    Np = round_up(N, TN)
    if Np != N:                                   # pad rows so the grid divides
        x = jnp.pad(x, ((0, Np - N), (0, 0)))
        if mask is not None:
            mask = jnp.pad(mask, ((0, Np - N), (0, 0)))

    x_b = jnp.dtype(x.dtype).itemsize
    w_b = jnp.dtype(w.dtype).itemsize
    need = 2 * TN * K * x_b + 2 * K * M * w_b + 2 * TN * M * 4 + 2 * TN * 4
    # TODO(synk): add a K-reduction grid axis + f32 accumulator if K*M ever gets
    # large enough to squeeze VMEM; for fc2 (K=Hp, M=Op) a single block is fine.
    cparams = pltpu.CompilerParams(
        dimension_semantics=("parallel",),
        vmem_limit_bytes=int(min(96 * MIB, max(32 * MIB, need + 4 * MIB))))

    x_spec = pl.BlockSpec((TN, K), lambda i: (i, 0))
    w_spec = pl.BlockSpec((K, M), lambda i: (0, 0))      # resident weight block
    b_spec = pl.BlockSpec((1, M), lambda i: (0, 0))
    out_spec = pl.BlockSpec((TN, M), lambda i: (i, 0))   # lane-dense output

    if mask is None:
        out = pl.pallas_call(
            functools.partial(_linear_kernel, apply_sigmoid=apply_sigmoid),
            out_shape=jax.ShapeDtypeStruct((Np, M), jnp.float32),
            grid=(Np // TN,),
            in_specs=[x_spec, w_spec, b_spec],
            out_specs=out_spec,
            compiler_params=cparams,
        )(x, w, b.reshape(1, M))
    else:
        m_spec = pl.BlockSpec((TN, 1), lambda i: (i, 0))
        out = pl.pallas_call(
            functools.partial(_linear_kernel_masked, apply_sigmoid=apply_sigmoid),
            out_shape=jax.ShapeDtypeStruct((Np, M), jnp.float32),
            grid=(Np // TN,),
            in_specs=[x_spec, m_spec, w_spec, b_spec],
            out_specs=out_spec,
            compiler_params=cparams,
        )(x, mask, w, b.reshape(1, M))
    return out[:N]


# --------------------------------------------------------------------------- #
# Fused GRU layer: chunk-wide input projection (MXU) + serial recurrence.
# Gate layout is lane-aligned: gate g lives in columns [g*Hp, g*Hp + H).
# grid = (batch tiles [parallel], time chunks [arbitrary, MUST stay innermost]).
# h_scr carries the hidden state across time chunks of one batch tile and is
# re-zeroed when the sequential time axis restarts; do NOT reorder grid axes or
# mark the time axis parallel.
# --------------------------------------------------------------------------- #
def gru_layer_kernel(x_ref, wih_ref, bias_ref, whh_ref, bhhn_ref, o_ref,
                     h_scr, gi_scr, *, unroll):
    Tc, Bb, Fp = x_ref.shape
    Hp = h_scr.shape[1]
    mm_dtype = whh_ref.dtype

    @pl.when(pl.program_id(1) == 0)                 # new batch tile -> h0 = zeros
    def _():
        h_scr[...] = jnp.zeros_like(h_scr)

    # 1) time-independent input projection for the whole chunk: one MXU matmul.
    #    The recurrence below is otherwise MXU-idle on the serial dependency,
    #    so this is nearly free and removes the GI slab HBM round-trip.
    x_flat = x_ref[...].reshape(Tc * Bb, Fp).astype(mm_dtype)
    gi = jnp.dot(x_flat, wih_ref[...], preferred_element_type=jnp.float32)
    gi_scr[...] = (gi + bias_ref[...]).reshape(Tc, Bb, 3 * Hp)

    # b_hh for the n-gate only (r/z b_hh already folded into bias); hoisted bcast.
    bhh_n = jnp.broadcast_to(bhhn_ref[...], (Bb, Hp))
    whh = whh_ref[...]

    # 2) sequential recurrence: only the h-dependent half per step.
    def step(i, h):
        gi_t = gi_scr[i]                                            # (Bb, 3*Hp)
        gh = jnp.dot(h.astype(mm_dtype), whh,
                     preferred_element_type=jnp.float32)            # (Bb, 3*Hp)
        r = jax.nn.sigmoid(gi_t[:, 0:Hp] + gh[:, 0:Hp])
        z = jax.nn.sigmoid(gi_t[:, Hp:2 * Hp] + gh[:, Hp:2 * Hp])
        n = jnp.tanh(gi_t[:, 2 * Hp:3 * Hp] + r * (gh[:, 2 * Hp:3 * Hp] + bhh_n))
        h_new = n + z * (h - n)                     # == (1-z)*n + z*h, one mul less
        o_ref[i] = h_new.astype(o_ref.dtype)        # lane-dense (Hp = k*128)
        return h_new

    h_scr[...] = jax.lax.fori_loop(0, Tc, step, h_scr[...], unroll=unroll)
    # TODO(synk): for tiny Bb, pltpu.matmul_push_rhs/acc_lhs/pop could keep W_hh
    # stationary in MXU weight registers across the unrolled steps; skipped for
    # portability.


def gru_layer(x_seq, layer, *, Tc, Bb, unroll, vmem_limit, act_dtype):
    Tp, Bp, Fp = x_seq.shape
    Hp = layer["whh_t"].shape[0]
    H3 = 3 * Hp
    return pl.pallas_call(
        functools.partial(gru_layer_kernel, unroll=unroll),
        out_shape=jax.ShapeDtypeStruct((Tp, Bp, Hp), act_dtype),
        grid=(Bp // Bb, Tp // Tc),                  # (batch tiles, time chunks)
        in_specs=[
            pl.BlockSpec((Tc, Bb, Fp), lambda b, c: (c, b, 0)),    # x chunk
            pl.BlockSpec((Fp, H3), lambda b, c: (0, 0)),           # W_ih^T (resident)
            pl.BlockSpec((1, H3), lambda b, c: (0, 0)),            # folded bias
            pl.BlockSpec((Hp, H3), lambda b, c: (0, 0)),           # W_hh^T (resident)
            pl.BlockSpec((1, Hp), lambda b, c: (0, 0)),            # b_hh (n gate)
        ],
        out_specs=pl.BlockSpec((Tc, Bb, Hp), lambda b, c: (c, b, 0)),
        scratch_shapes=[
            pltpu.VMEM((Bb, Hp), jnp.float32),      # carried hidden state (f32)
            pltpu.VMEM((Tc, Bb, H3), jnp.float32),  # chunk-wide GI
        ],
        compiler_params=pltpu.CompilerParams(
            dimension_semantics=("parallel", "arbitrary"),
            vmem_limit_bytes=vmem_limit),
    )(x_seq, layer["wih_t"], layer["bias"], layer["whh_t"], layer["bhh_n"])


def _plan_recurrence(T, Bb, Fp, Hp, act_bytes, w_bytes, vmem_budget=40 * MIB):
    """Pick the largest time chunk Tc whose pipelined footprint fits a budget
    conservative enough for v7x's 64 MiB physical VMEM."""
    fixed = 2 * (Fp + Hp) * 3 * Hp * w_bytes        # resident W_ih^T, W_hh^T
    fixed += Bb * Hp * 4 + 4 * 4 * Hp               # h scratch + biases
    per_t = Bb * (2 * Fp * act_bytes + 2 * Hp * act_bytes + 3 * Hp * 4)
    tc = max(1, (vmem_budget - fixed) // per_t)
    tc = int(min(T, tc, 256))
    need = fixed + tc * per_t
    vmem_limit = int(min(96 * MIB, max(32 * MIB, need + 8 * MIB)))
    # shape-aware unroll: full unroll only if per-step live set fits in vregs
    if tc <= 32 and Bb * 3 * Hp * 4 <= 96 * 1024:
        unroll = True
    else:
        unroll = int(min(4, tc))
    return tc, vmem_limit, unroll


# --------------------------------------------------------------------------- #
# Parameter packing: transpose + pad weights to lane-aligned gate layout and
# pre-cast matmul operands (weights) to `matmul_dtype`; biases stay f32.
# --------------------------------------------------------------------------- #
def _pad_gate_cols(w_t, rows_pad, H, Hp):
    """w_t: (R, 3H) -> (rows_pad, 3*Hp); gate g starts at column g*Hp."""
    R = w_t.shape[0]
    out = jnp.zeros((rows_pad, 3 * Hp), jnp.float32)
    for g in range(3):
        out = out.at[:R, g * Hp:g * Hp + H].set(w_t[:, g * H:(g + 1) * H])
    return out


def pack_params(params, *, matmul_dtype=jnp.bfloat16):
    H = params["gru"][0]["w_hh"].shape[1]
    O = params["fc2"]["w"].shape[0]
    Hp = round_up(H, LANE)
    Op = round_up(O, LANE)
    is_f32 = jnp.dtype(matmul_dtype) == jnp.dtype(jnp.float32)
    act_dtype = jnp.float32 if is_f32 else jnp.bfloat16
    packed = {"H": H, "Hp": Hp, "O": O, "Op": Op, "gru": [],
              "matmul_dtype": matmul_dtype, "act_dtype": act_dtype}
    # TODO(synk): for H << 128, packing all 3 gates into round_up(3H,128) lanes
    # (instead of 3*Hp) would cut GI/W/h_seq lane waste ~3x at the cost of
    # non-lane-aligned gate slices; skipped for simplicity.
    for layer in params["gru"]:
        w_ih, w_hh = layer["w_ih"], layer["w_hh"]
        b_ih, b_hh = layer["b_ih"], layer["b_hh"]
        Fin = w_ih.shape[1]
        Fp = round_up(Fin, LANE)
        wih_t = _pad_gate_cols(w_ih.T, Fp, H, Hp).astype(matmul_dtype)   # (Fp, 3Hp)
        whh_t = _pad_gate_cols(w_hh.T, Hp, H, Hp).astype(matmul_dtype)   # (Hp, 3Hp)
        # Fold b_ih (all gates) + b_hh (r,z gates) into the input-projection bias.
        bias = jnp.zeros((1, 3 * Hp), jnp.float32)
        bias = bias.at[0, 0:H].set(b_ih[0:H] + b_hh[0:H])                     # r
        bias = bias.at[0, Hp:Hp + H].set(b_ih[H:2 * H] + b_hh[H:2 * H])       # z
        bias = bias.at[0, 2 * Hp:2 * Hp + H].set(b_ih[2 * H:3 * H])           # n
        bhh_n = jnp.zeros((1, Hp), jnp.float32).at[0, :H].set(b_hh[2 * H:3 * H])
        packed["gru"].append({"wih_t": wih_t, "whh_t": whh_t, "bias": bias,
                              "bhh_n": bhh_n, "Fp": Fp})
    w2 = jnp.zeros((Hp, Op), jnp.float32).at[:H, :O].set(params["fc2"]["w"].T)
    b2 = jnp.zeros((Op,), jnp.float32).at[:O].set(params["fc2"]["b"])
    packed["fc2"] = {"w": w2.astype(matmul_dtype), "b": b2}
    return packed


# --------------------------------------------------------------------------- #
# Full forward
# --------------------------------------------------------------------------- #
def vanilla_gru_forward(packed, x_btf, lengths):
    """x_btf: (B, T, F) batch_first; lengths: (B,) int32 (sorted descending)."""
    B, T, F = x_btf.shape
    Hp, O = packed["Hp"], packed["O"]
    act_dtype = packed["act_dtype"]
    act_bytes = jnp.dtype(act_dtype).itemsize
    w_bytes = jnp.dtype(packed["matmul_dtype"]).itemsize

    Bp = round_up(B, SUBLANE)
    # Keep Bb (matmul M dim) as large as possible (<=128) so the per-step
    # h @ W_hh matmul is not MXU fill/drain bound; >1 batch tiles feed the
    # second v7x TensorCore via the "parallel" axis.
    Bb = Bp if Bp <= 128 else 128
    Bp = round_up(Bp, Bb)

    Fp0 = packed["gru"][0]["Fp"]
    Fmax = max(layer["Fp"] for layer in packed["gru"])
    Tc, vmem_limit, unroll = _plan_recurrence(T, Bb, Fmax, Hp, act_bytes, w_bytes)
    Tp = round_up(T, Tc)

    # time-major padded input (padded rows/steps/features are zero -> harmless)
    x_tbf = jnp.transpose(x_btf, (1, 0, 2)).astype(act_dtype)
    x_tbf = jnp.pad(x_tbf, ((0, Tp - T), (0, Bp - B), (0, Fp0 - F)))

    h_seq = x_tbf
    for layer in packed["gru"]:
        h_seq = gru_layer(h_seq, layer, Tc=Tc, Bb=Bb, unroll=unroll,
                          vmem_limit=vmem_limit, act_dtype=act_dtype)

    # pad_packed_sequence(batch_first) -> view(-1, H); padded timesteps are
    # zeroed (mask) before fc2, exactly matching PyTorch (fc2(0)=bias -> sigmoid).
    y = jnp.transpose(h_seq[:T, :B, :], (1, 0, 2)).reshape(B * T, Hp)
    mask = (jnp.arange(T)[None, :] < lengths[:, None]).astype(jnp.float32)
    mask = mask.reshape(B * T, 1)
    out = linear_rows(y, packed["fc2"]["w"], packed["fc2"]["b"],
                      mask=mask, apply_sigmoid=True)          # (B*T, Op)
    return out[:, :O]


# ------------------------------------------------------------ parameter setup
def init_params(key, input_size, hidden_size, num_layers, output_size):
    params = {"gru": []}
    k = 1.0 / jnp.sqrt(hidden_size)
    for layer in range(num_layers):
        in_f = input_size if layer == 0 else hidden_size
        key, k1, k2, k3, k4 = jax.random.split(key, 5)
        params["gru"].append({
            "w_ih": jax.random.uniform(k1, (3 * hidden_size, in_f), jnp.float32, -k, k),
            "w_hh": jax.random.uniform(k2, (3 * hidden_size, hidden_size), jnp.float32, -k, k),
            "b_ih": jax.random.uniform(k3, (3 * hidden_size,), jnp.float32, -k, k),
            "b_hh": jax.random.uniform(k4, (3 * hidden_size,), jnp.float32, -k, k),
        })
    key, k1, k2 = jax.random.split(key, 3)
    kl = 1.0 / jnp.sqrt(hidden_size)
    params["fc2"] = {
        "w": jax.random.uniform(k1, (output_size, hidden_size), jnp.float32, -kl, kl),
        "b": jax.random.uniform(k2, (output_size,), jnp.float32, -kl, kl),
    }
    return params


# ---------------------------------------------------------- pure-JAX reference
def reference_forward(params, x_btf, lengths):
    B, T, _ = x_btf.shape
    hp = jax.lax.Precision.HIGHEST
    h_seq = jnp.transpose(x_btf, (1, 0, 2))
    for layer in params["gru"]:
        H = layer["w_hh"].shape[1]
        wih_t, whh_t = layer["w_ih"].T, layer["w_hh"].T
        bih, bhh = layer["b_ih"], layer["b_hh"]

        def step(h, x_t):
            gi = jnp.dot(x_t, wih_t, precision=hp) + bih
            gh = jnp.dot(h, whh_t, precision=hp) + bhh
            r = jax.nn.sigmoid(gi[:, :H] + gh[:, :H])
            z = jax.nn.sigmoid(gi[:, H:2 * H] + gh[:, H:2 * H])
            n = jnp.tanh(gi[:, 2 * H:] + r * gh[:, 2 * H:])
            h_new = (1.0 - z) * n + z * h
            return h_new, h_new

        h0 = jnp.zeros((B, H), jnp.float32)
        _, h_seq = jax.lax.scan(step, h0, h_seq)
    y = jnp.transpose(h_seq, (1, 0, 2)).reshape(B * T, -1)
    mask = (jnp.arange(T)[None, :] < lengths[:, None]).astype(jnp.float32).reshape(B * T, 1)
    y = y * mask
    return jax.nn.sigmoid(jnp.dot(y, params["fc2"]["w"].T, precision=hp) + params["fc2"]["b"])


if __name__ == "__main__":
    input_size, hidden_size, num_layers = 4, 32, 2
    batch_size, seq_len, output_size = 2, 8, 2

    key = jax.random.PRNGKey(0)
    key, pkey, xkey = jax.random.split(key, 3)
    params = init_params(pkey, input_size, hidden_size, num_layers, output_size)

    x = jax.random.normal(xkey, (batch_size, seq_len, input_size), jnp.float32)
    lengths = jnp.array([8, 5], dtype=jnp.int32)   # sorted descending (enforce_sorted)

    ref = jax.block_until_ready(reference_forward(params, x, lengths))

    # f32 matmul-operand path: tight check vs. the HIGHEST-precision reference.
    packed_f32 = pack_params(params, matmul_dtype=jnp.float32)
    out_f32 = jax.block_until_ready(vanilla_gru_forward(packed_f32, x, lengths))
    assert out_f32.shape == (batch_size * seq_len, output_size)
    assert jnp.allclose(out_f32, ref, atol=1e-3, rtol=1e-3), "f32 mismatch vs reference"

    # bf16 matmul-operand path (default for perf on v5e/v6e/v7x): loose check.
    packed_bf16 = pack_params(params, matmul_dtype=jnp.bfloat16)
    out_bf16 = jax.block_until_ready(vanilla_gru_forward(packed_bf16, x, lengths))
    assert out_bf16.shape == (batch_size * seq_len, output_size)
    assert jnp.allclose(out_bf16, ref, atol=5e-2, rtol=5e-2), "bf16 mismatch vs reference"

    print("KERNEL_OK")
</pallas_src>

<mosaic_0001>
module attributes {stable_mosaic.version = 11 : i64} {
  func.func @gru_layer_kernel(%arg0: i32, %arg1: i32, %arg2: memref<8x8x128xf32, #tpu.memory_space<vmem>>, %arg3: memref<128x384xf32, #tpu.memory_space<vmem>>, %arg4: memref<1x384xf32, #tpu.memory_space<vmem>>, %arg5: memref<128x384xf32, #tpu.memory_space<vmem>>, %arg6: memref<1x128xf32, #tpu.memory_space<vmem>>, %arg7: memref<8x8x128xf32, #tpu.memory_space<vmem>>, %arg8: memref<8x128xf32, #tpu.memory_space<vmem>>, %arg9: memref<8x8x384xf32, #tpu.memory_space<vmem>>) attributes {dimension_semantics = [#tpu.dimension_semantics<parallel>, #tpu.dimension_semantics<arbitrary>], iteration_bounds = array<i64: 1, 1>, scalar_prefetch = 0 : i64, scratch_operands = 2 : i64, tpu.core_type = #tpu.core_type<tc>, window_params = [{transform_indices = @transform_0, window_bounds = array<i64: 8, 8, 128>}, {pipeline_mode = #tpu.pipeline_mode<synchronous>, transform_indices = @transform_1, window_bounds = array<i64: 128, 384>}, {pipeline_mode = #tpu.pipeline_mode<synchronous>, transform_indices = @transform_2, window_bounds = array<i64: 1, 384>}, {pipeline_mode = #tpu.pipeline_mode<synchronous>, transform_indices = @transform_3, window_bounds = array<i64: 128, 384>}, {pipeline_mode = #tpu.pipeline_mode<synchronous>, transform_indices = @transform_4, window_bounds = array<i64: 1, 128>}, {transform_indices = @transform_5, window_bounds = array<i64: 8, 8, 128>}]} {
    %c0_i32 = arith.constant 0 : i32
    %0 = arith.cmpi eq, %arg1, %c0_i32 : i32
    %1 = arith.extui %0 : i1 to i32
    %c0_i32_0 = arith.constant 0 : i32
    %2 = arith.cmpi ne, %1, %c0_i32_0 : i32
    scf.if %2 {
      %cst_75 = arith.constant 0.000000e+00 : f32
      %282 = vector.broadcast %cst_75 : f32 to vector<8x128xf32>
      %c0_76 = arith.constant 0 : index
      %c0_77 = arith.constant 0 : index
      %283 = vector.load %arg8[%c0_76, %c0_77] : memref<8x128xf32, #tpu.memory_space<vmem>>, vector<8x128xf32>
      tpu.vector_store %arg8[%c0_76, %c0_77], %282 {strides = array<i32>} : memref<8x128xf32, #tpu.memory_space<vmem>>, vector<8x128xf32>,
    } else {
    }
    %c0 = arith.constant 0 : index
    %c0_1 = arith.constant 0 : index
    %c0_2 = arith.constant 0 : index
    %3 = vector.load %arg2[%c0, %c0_1, %c0_2] : memref<8x8x128xf32, #tpu.memory_space<vmem>>, vector<8x8x128xf32>
    %4 = vector.shape_cast %3 : vector<8x8x128xf32> to vector<64x128xf32>
    %c0_3 = arith.constant 0 : index
    %c0_4 = arith.constant 0 : index
    %5 = vector.load %arg3[%c0_3, %c0_4] : memref<128x384xf32, #tpu.memory_space<vmem>>, vector<128x384xf32>
    %cst = arith.constant dense<0.000000e+00> : vector<64x384xf32>
    %6 = tpu.matmul %4, %5, %cst {dimension_numbers = #tpu.dot_dimension_numbers<[1], [0], [0], [1], [0, 0, 1, 1], [], []>} : vector<64x128xf32>, vector<128x384xf32>, vector<64x384xf32> -> vector<64x384xf32>
    %c0_5 = arith.constant 0 : index
    %c0_6 = arith.constant 0 : index
    %7 = vector.load %arg4[%c0_5, %c0_6] : memref<1x384xf32, #tpu.memory_space<vmem>>, vector<1x384xf32>
    %8 = vector.broadcast %7 : vector<1x384xf32> to vector<64x384xf32>
    %9 = arith.addf %6, %8 : vector<64x384xf32>
    %10 = vector.shape_cast %9 : vector<64x384xf32> to vector<8x8x384xf32>
    %c0_7 = arith.constant 0 : index
    %c0_8 = arith.constant 0 : index
    %c0_9 = arith.constant 0 : index
    %11 = vector.load %arg9[%c0_7, %c0_8, %c0_9] : memref<8x8x384xf32, #tpu.memory_space<vmem>>, vector<8x8x384xf32>
    tpu.vector_store %arg9[%c0_7, %c0_8, %c0_9], %10 {strides = array<i32>} : memref<8x8x384xf32, #tpu.memory_space<vmem>>, vector<8x8x384xf32>,
    %c0_10 = arith.constant 0 : index
    %c0_11 = arith.constant 0 : index
    %12 = vector.load %arg6[%c0_10, %c0_11] : memref<1x128xf32, #tpu.memory_space<vmem>>, vector<1x128xf32>
    %13 = vector.shape_cast %12 : vector<1x128xf32> to vector<1x128xf32>
    %14 = vector.broadcast %13 : vector<1x128xf32> to vector<8x128xf32>
    %c0_12 = arith.constant 0 : index
    %c0_13 = arith.constant 0 : index
    %15 = vector.load %arg5[%c0_12, %c0_13] : memref<128x384xf32, #tpu.memory_space<vmem>>, vector<128x384xf32>
    %c0_14 = arith.constant 0 : index
    %c0_15 = arith.constant 0 : index
    %16 = vector.load %arg8[%c0_14, %c0_15] : memref<8x128xf32, #tpu.memory_space<vmem>>, vector<8x128xf32>
    %c0_i32_16 = arith.constant 0 : i32
    %17 = arith.index_cast %c0_i32_16 : i32 to index
    %c0_17 = arith.constant 0 : index
    %c0_18 = arith.constant 0 : index
    %18 = vector.load %arg9[%17, %c0_17, %c0_18] : memref<8x8x384xf32, #tpu.memory_space<vmem>>, vector<1x8x384xf32>
    %19 = vector.shape_cast %18 : vector<1x8x384xf32> to vector<8x384xf32>
    %cst_19 = arith.constant dense<0.000000e+00> : vector<8x384xf32>
    %20 = tpu.matmul %16, %15, %cst_19 {dimension_numbers = #tpu.dot_dimension_numbers<[1], [0], [0], [1], [0, 0, 1, 1], [], []>} : vector<8x128xf32>, vector<128x384xf32>, vector<8x384xf32> -> vector<8x384xf32>
    %21 = vector.extract_strided_slice %19 {offsets = [0, 0], sizes = [8, 128], strides = [1, 1]} : vector<8x384xf32> to vector<8x128xf32>
    %22 = vector.extract_strided_slice %20 {offsets = [0, 0], sizes = [8, 128], strides = [1, 1]} : vector<8x384xf32> to vector<8x128xf32>
    %23 = arith.addf %21, %22 : vector<8x128xf32>
    %24 = arith.negf %23 : vector<8x128xf32>
    %25 = math.exp %24 : vector<8x128xf32>
    %cst_20 = arith.constant 1.000000e+00 : f32
    %26 = vector.broadcast %cst_20 : f32 to vector<8x128xf32>
    %27 = arith.addf %26, %25 : vector<8x128xf32>
    %28 = arith.divf %26, %27 : vector<8x128xf32>
    %29 = vector.extract_strided_slice %19 {offsets = [0, 128], sizes = [8, 128], strides = [1, 1]} : vector<8x384xf32> to vector<8x128xf32>
    %30 = vector.extract_strided_slice %20 {offsets = [0, 128], sizes = [8, 128], strides = [1, 1]} : vector<8x384xf32> to vector<8x128xf32>
    %31 = arith.addf %29, %30 : vector<8x128xf32>
    %32 = arith.negf %31 : vector<8x128xf32>
    %33 = math.exp %32 : vector<8x128xf32>
    %cst_21 = arith.constant 1.000000e+00 : f32
    %34 = vector.broadcast %cst_21 : f32 to vector<8x128xf32>
    %35 = arith.addf %34, %33 : vector<8x128xf32>
    %36 = arith.divf %34, %35 : vector<8x128xf32>
    %37 = vector.extract_strided_slice %19 {offsets = [0, 256], sizes = [8, 128], strides = [1, 1]} : vector<8x384xf32> to vector<8x128xf32>
    %38 = vector.extract_strided_slice %20 {offsets = [0, 256], sizes = [8, 128], strides = [1, 1]} : vector<8x384xf32> to vector<8x128xf32>
    %39 = arith.addf %38, %14 : vector<8x128xf32>
    %40 = arith.mulf %28, %39 : vector<8x128xf32>
    %41 = arith.addf %37, %40 : vector<8x128xf32>
    %42 = math.tanh %41 : vector<8x128xf32>
    %43 = arith.subf %16, %42 : vector<8x128xf32>
    %44 = arith.mulf %36, %43 : vector<8x128xf32>
    %45 = arith.addf %42, %44 : vector<8x128xf32>
    %46 = arith.index_cast %c0_i32_16 : i32 to index
    %c0_22 = arith.constant 0 : index
    %c0_23 = arith.constant 0 : index
    %47 = vector.load %arg7[%46, %c0_22, %c0_23] : memref<8x8x128xf32, #tpu.memory_space<vmem>>, vector<1x8x128xf32>
    %48 = vector.shape_cast %47 : vector<1x8x128xf32> to vector<8x128xf32>
    %49 = vector.shape_cast %45 : vector<8x128xf32> to vector<1x8x128xf32>
    tpu.vector_store %arg7[%46, %c0_22, %c0_23], %49 {strides = array<i32>} : memref<8x8x128xf32, #tpu.memory_space<vmem>>, vector<1x8x128xf32>,
    %c1_i32 = arith.constant 1 : i32
    %50 = arith.index_cast %c1_i32 : i32 to index
    %c0_24 = arith.constant 0 : index
    %c0_25 = arith.constant 0 : index
    %51 = vector.load %arg9[%50, %c0_24, %c0_25] : memref<8x8x384xf32, #tpu.memory_space<vmem>>, vector<1x8x384xf32>
    %52 = vector.shape_cast %51 : vector<1x8x384xf32> to vector<8x384xf32>
    %cst_26 = arith.constant dense<0.000000e+00> : vector<8x384xf32>
    %53 = tpu.matmul %45, %15, %cst_26 {dimension_numbers = #tpu.dot_dimension_numbers<[1], [0], [0], [1], [0, 0, 1, 1], [], []>} : vector<8x128xf32>, vector<128x384xf32>, vector<8x384xf32> -> vector<8x384xf32>
    %54 = vector.extract_strided_slice %52 {offsets = [0, 0], sizes = [8, 128], strides = [1, 1]} : vector<8x384xf32> to vector<8x128xf32>
    %55 = vector.extract_strided_slice %53 {offsets = [0, 0], sizes = [8, 128], strides = [1, 1]} : vector<8x384xf32> to vector<8x128xf32>
    %56 = arith.addf %54, %55 : vector<8x128xf32>
    %57 = arith.negf %56 : vector<8x128xf32>
    %58 = math.exp %57 : vector<8x128xf32>
    %cst_27 = arith.constant 1.000000e+00 : f32
    %59 = vector.broadcast %cst_27 : f32 to vector<8x128xf32>
    %60 = arith.addf %59, %58 : vector<8x128xf32>
    %61 = arith.divf %59, %60 : vector<8x128xf32>
    %62 = vector.extract_strided_slice %52 {offsets = [0, 128], sizes = [8, 128], strides = [1, 1]} : vector<8x384xf32> to vector<8x128xf32>
    %63 = vector.extract_strided_slice %53 {offsets = [0, 128], sizes = [8, 128], strides = [1, 1]} : vector<8x384xf32> to vector<8x128xf32>
    %64 = arith.addf %62, %63 : vector<8x128xf32>
    %65 = arith.negf %64 : vector<8x128xf32>
    %66 = math.exp %65 : vector<8x128xf32>
    %cst_28 = arith.constant 1.000000e+00 : f32
    %67 = vector.broadcast %cst_28 : f32 to vector<8x128xf32>
    %68 = arith.addf %67, %66 : vector<8x128xf32>
    %69 = arith.divf %67, %68 : vector<8x128xf32>
    %70 = vector.extract_strided_slice %52 {offsets = [0, 256], sizes = [8, 128], strides = [1, 1]} : vector<8x384xf32> to vector<8x128xf32>
    %71 = vector.extract_strided_slice %53 {offsets = [0, 256], sizes = [8, 128], strides = [1, 1]} : vector<8x384xf32> to vector<8x128xf32>
    %72 = arith.addf %71, %14 : vector<8x128xf32>
    %73 = arith.mulf %61, %72 : vector<8x128xf32>
    %74 = arith.addf %70, %73 : vector<8x128xf32>
    %75 = math.tanh %74 : vector<8x128xf32>
    %76 = arith.subf %45, %75 : vector<8x128xf32>
    %77 = arith.mulf %69, %76 : vector<8x128xf32>
    %78 = arith.addf %75, %77 : vector<8x128xf32>
    %79 = arith.index_cast %c1_i32 : i32 to index
    %c0_29 = arith.constant 0 : index
    %c0_30 = arith.constant 0 : index
    %80 = vector.load %arg7[%79, %c0_29, %c0_30] : memref<8x8x128xf32, #tpu.memory_space<vmem>>, vector<1x8x128xf32>
    %81 = vector.shape_cast %80 : vector<1x8x128xf32> to vector<8x128xf32>
    %82 = vector.shape_cast %78 : vector<8x128xf32> to vector<1x8x128xf32>
    tpu.vector_store %arg7[%79, %c0_29, %c0_30], %82 {strides = array<i32>} : memref<8x8x128xf32, #tpu.memory_space<vmem>>, vector<1x8x128xf32>,
    %c2_i32 = arith.constant 2 : i32
    %83 = arith.index_cast %c2_i32 : i32 to index
    %c0_31 = arith.constant 0 : index
    %c0_32 = arith.constant 0 : index
    %84 = vector.load %arg9[%83, %c0_31, %c0_32] : memref<8x8x384xf32, #tpu.memory_space<vmem>>, vector<1x8x384xf32>
    %85 = vector.shape_cast %84 : vector<1x8x384xf32> to vector<8x384xf32>
    %cst_33 = arith.constant dense<0.000000e+00> : vector<8x384xf32>
    %86 = tpu.matmul %78, %15, %cst_33 {dimension_numbers = #tpu.dot_dimension_numbers<[1], [0], [0], [1], [0, 0, 1, 1], [], []>} : vector<8x128xf32>, vector<128x384xf32>, vector<8x384xf32> -> vector<8x384xf32>
    %87 = vector.extract_strided_slice %85 {offsets = [0, 0], sizes = [8, 128], strides = [1, 1]} : vector<8x384xf32> to vector<8x128xf32>
    %88 = vector.extract_strided_slice %86 {offsets = [0, 0], sizes = [8, 128], strides = [1, 1]} : vector<8x384xf32> to vector<8x128xf32>
    %89 = arith.addf %87, %88 : vector<8x128xf32>
    %90 = arith.negf %89 : vector<8x128xf32>
    %91 = math.exp %90 : vector<8x128xf32>
    %cst_34 = arith.constant 1.000000e+00 : f32
    %92 = vector.broadcast %cst_34 : f32 to vector<8x128xf32>
    %93 = arith.addf %92, %91 : vector<8x128xf32>
    %94 = arith.divf %92, %93 : vector<8x128xf32>
    %95 = vector.extract_strided_slice %85 {offsets = [0, 128], sizes = [8, 128], strides = [1, 1]} : vector<8x384xf32> to vector<8x128xf32>
    %96 = vector.extract_strided_slice %86 {offsets = [0, 128], sizes = [8, 128], strides = [1, 1]} : vector<8x384xf32> to vector<8x128xf32>
    %97 = arith.addf %95, %96 : vector<8x128xf32>
    %98 = arith.negf %97 : vector<8x128xf32>
    %99 = math.exp %98 : vector<8x128xf32>
    %cst_35 = arith.constant 1.000000e+00 : f32
    %100 = vector.broadcast %cst_35 : f32 to vector<8x128xf32>
    %101 = arith.addf %100, %99 : vector<8x128xf32>
    %102 = arith.divf %100, %101 : vector<8x128xf32>
    %103 = vector.extract_strided_slice %85 {offsets = [0, 256], sizes = [8, 128], strides = [1, 1]} : vector<8x384xf32> to vector<8x128xf32>
    %104 = vector.extract_strided_slice %86 {offsets = [0, 256], sizes = [8, 128], strides = [1, 1]} : vector<8x384xf32> to vector<8x128xf32>
    %105 = arith.addf %104, %14 : vector<8x128xf32>
    %106 = arith.mulf %94, %105 : vector<8x128xf32>
    %107 = arith.addf %103, %106 : vector<8x128xf32>
    %108 = math.tanh %107 : vector<8x128xf32>
    %109 = arith.subf %78, %108 : vector<8x128xf32>
    %110 = arith.mulf %102, %109 : vector<8x128xf32>
    %111 = arith.addf %108, %110 : vector<8x128xf32>
    %112 = arith.index_cast %c2_i32 : i32 to index
    %c0_36 = arith.constant 0 : index
    %c0_37 = arith.constant 0 : index
    %113 = vector.load %arg7[%112, %c0_36, %c0_37] : memref<8x8x128xf32, #tpu.memory_space<vmem>>, vector<1x8x128xf32>
    %114 = vector.shape_cast %113 : vector<1x8x128xf32> to vector<8x128xf32>
    %115 = vector.shape_cast %111 : vector<8x128xf32> to vector<1x8x128xf32>
    tpu.vector_store %arg7[%112, %c0_36, %c0_37], %115 {strides = array<i32>} : memref<8x8x128xf32, #tpu.memory_space<vmem>>, vector<1x8x128xf32>,
    %c3_i32 = arith.constant 3 : i32
    %116 = arith.index_cast %c3_i32 : i32 to index
    %c0_38 = arith.constant 0 : index
    %c0_39 = arith.constant 0 : index
    %117 = vector.load %arg9[%116, %c0_38, %c0_39] : memref<8x8x384xf32, #tpu.memory_space<vmem>>, vector<1x8x384xf32>
    %118 = vector.shape_cast %117 : vector<1x8x384xf32> to vector<8x384xf32>
    %cst_40 = arith.constant dense<0.000000e+00> : vector<8x384xf32>
    %119 = tpu.matmul %111, %15, %cst_40 {dimension_numbers = #tpu.dot_dimension_numbers<[1], [0], [0], [1], [0, 0, 1, 1], [], []>} : vector<8x128xf32>, vector<128x384xf32>, vector<8x384xf32> -> vector<8x384xf32>
    %120 = vector.extract_strided_slice %118 {offsets = [0, 0], sizes = [8, 128], strides = [1, 1]} : vector<8x384xf32> to vector<8x128xf32>
    %121 = vector.extract_strided_slice %119 {offsets = [0, 0], sizes = [8, 128], strides = [1, 1]} : vector<8x384xf32> to vector<8x128xf32>
    %122 = arith.addf %120, %121 : vector<8x128xf32>
    %123 = arith.negf %122 : vector<8x128xf32>
    %124 = math.exp %123 : vector<8x128xf32>
    %cst_41 = arith.constant 1.000000e+00 : f32
    %125 = vector.broadcast %cst_41 : f32 to vector<8x128xf32>
    %126 = arith.addf %125, %124 : vector<8x128xf32>
    %127 = arith.divf %125, %126 : vector<8x128xf32>
    %128 = vector.extract_strided_slice %118 {offsets = [0, 128], sizes = [8, 128], strides = [1, 1]} : vector<8x384xf32> to vector<8x128xf32>
    %129 = vector.extract_strided_slice %119 {offsets = [0, 128], sizes = [8, 128], strides = [1, 1]} : vector<8x384xf32> to vector<8x128xf32>
    %130 = arith.addf %128, %129 : vector<8x128xf32>
    %131 = arith.negf %130 : vector<8x128xf32>
    %132 = math.exp %131 : vector<8x128xf32>
    %cst_42 = arith.constant 1.000000e+00 : f32
    %133 = vector.broadcast %cst_42 : f32 to vector<8x128xf32>
    %134 = arith.addf %133, %132 : vector<8x128xf32>
    %135 = arith.divf %133, %134 : vector<8x128xf32>
    %136 = vector.extract_strided_slice %118 {offsets = [0, 256], sizes = [8, 128], strides = [1, 1]} : vector<8x384xf32> to vector<8x128xf32>
    %137 = vector.extract_strided_slice %119 {offsets = [0, 256], sizes = [8, 128], strides = [1, 1]} : vector<8x384xf32> to vector<8x128xf32>
    %138 = arith.addf %137, %14 : vector<8x128xf32>
    %139 = arith.mulf %127, %138 : vector<8x128xf32>
    %140 = arith.addf %136, %139 : vector<8x128xf32>
    %141 = math.tanh %140 : vector<8x128xf32>
    %142 = arith.subf %111, %141 : vector<8x128xf32>
    %143 = arith.mulf %135, %142 : vector<8x128xf32>
    %144 = arith.addf %141, %143 : vector<8x128xf32>
    %145 = arith.index_cast %c3_i32 : i32 to index
    %c0_43 = arith.constant 0 : index
    %c0_44 = arith.constant 0 : index
    %146 = vector.load %arg7[%145, %c0_43, %c0_44] : memref<8x8x128xf32, #tpu.memory_space<vmem>>, vector<1x8x128xf32>
    %147 = vector.shape_cast %146 : vector<1x8x128xf32> to vector<8x128xf32>
    %148 = vector.shape_cast %144 : vector<8x128xf32> to vector<1x8x128xf32>
    tpu.vector_store %arg7[%145, %c0_43, %c0_44], %148 {strides = array<i32>} : memref<8x8x128xf32, #tpu.memory_space<vmem>>, vector<1x8x128xf32>,
    %c4_i32 = arith.constant 4 : i32
    %149 = arith.index_cast %c4_i32 : i32 to index
    %c0_45 = arith.constant 0 : index
    %c0_46 = arith.constant 0 : index
    %150 = vector.load %arg9[%149, %c0_45, %c0_46] : memref<8x8x384xf32, #tpu.memory_space<vmem>>, vector<1x8x384xf32>
    %151 = vector.shape_cast %150 : vector<1x8x384xf32> to vector<8x384xf32>
    %cst_47 = arith.constant dense<0.000000e+00> : vector<8x384xf32>
    %152 = tpu.matmul %144, %15, %cst_47 {dimension_numbers = #tpu.dot_dimension_numbers<[1], [0], [0], [1], [0, 0, 1, 1], [], []>} : vector<8x128xf32>, vector<128x384xf32>, vector<8x384xf32> -> vector<8x384xf32>
    %153 = vector.extract_strided_slice %151 {offsets = [0, 0], sizes = [8, 128], strides = [1, 1]} : vector<8x384xf32> to vector<8x128xf32>
    %154 = vector.extract_strided_slice %152 {offsets = [0, 0], sizes = [8, 128], strides = [1, 1]} : vector<8x384xf32> to vector<8x128xf32>
    %155 = arith.addf %153, %154 : vector<8x128xf32>
    %156 = arith.negf %155 : vector<8x128xf32>
    %157 = math.exp %156 : vector<8x128xf32>
    %cst_48 = arith.constant 1.000000e+00 : f32
    %158 = vector.broadcast %cst_48 : f32 to vector<8x128xf32>
    %159 = arith.addf %158, %157 : vector<8x128xf32>
    %160 = arith.divf %158, %159 : vector<8x128xf32>
    %161 = vector.extract_strided_slice %151 {offsets = [0, 128], sizes = [8, 128], strides = [1, 1]} : vector<8x384xf32> to vector<8x128xf32>
    %162 = vector.extract_strided_slice %152 {offsets = [0, 128], sizes = [8, 128], strides = [1, 1]} : vector<8x384xf32> to vector<8x128xf32>
    %163 = arith.addf %161, %162 : vector<8x128xf32>
    %164 = arith.negf %163 : vector<8x128xf32>
    %165 = math.exp %164 : vector<8x128xf32>
    %cst_49 = arith.constant 1.000000e+00 : f32
    %166 = vector.broadcast %cst_49 : f32 to vector<8x128xf32>
    %167 = arith.addf %166, %165 : vector<8x128xf32>
    %168 = arith.divf %166, %167 : vector<8x128xf32>
    %169 = vector.extract_strided_slice %151 {offsets = [0, 256], sizes = [8, 128], strides = [1, 1]} : vector<8x384xf32> to vector<8x128xf32>
    %170 = vector.extract_strided_slice %152 {offsets = [0, 256], sizes = [8, 128], strides = [1, 1]} : vector<8x384xf32> to vector<8x128xf32>
    %171 = arith.addf %170, %14 : vector<8x128xf32>
    %172 = arith.mulf %160, %171 : vector<8x128xf32>
    %173 = arith.addf %169, %172 : vector<8x128xf32>
    %174 = math.tanh %173 : vector<8x128xf32>
    %175 = arith.subf %144, %174 : vector<8x128xf32>
    %176 = arith.mulf %168, %175 : vector<8x128xf32>
    %177 = arith.addf %174, %176 : vector<8x128xf32>
    %178 = arith.index_cast %c4_i32 : i32 to index
    %c0_50 = arith.constant 0 : index
    %c0_51 = arith.constant 0 : index
    %179 = vector.load %arg7[%178, %c0_50, %c0_51] : memref<8x8x128xf32, #tpu.memory_space<vmem>>, vector<1x8x128xf32>
    %180 = vector.shape_cast %179 : vector<1x8x128xf32> to vector<8x128xf32>
    %181 = vector.shape_cast %177 : vector<8x128xf32> to vector<1x8x128xf32>
    tpu.vector_store %arg7[%178, %c0_50, %c0_51], %181 {strides = array<i32>} : memref<8x8x128xf32, #tpu.memory_space<vmem>>, vector<1x8x128xf32>,
    %c5_i32 = arith.constant 5 : i32
    %182 = arith.index_cast %c5_i32 : i32 to index
    %c0_52 = arith.constant 0 : index
    %c0_53 = arith.constant 0 : index
    %183 = vector.load %arg9[%182, %c0_52, %c0_53] : memref<8x8x384xf32, #tpu.memory_space<vmem>>, vector<1x8x384xf32>
    %184 = vector.shape_cast %183 : vector<1x8x384xf32> to vector<8x384xf32>
    %cst_54 = arith.constant dense<0.000000e+00> : vector<8x384xf32>
    %185 = tpu.matmul %177, %15, %cst_54 {dimension_numbers = #tpu.dot_dimension_numbers<[1], [0], [0], [1], [0, 0, 1, 1], [], []>} : vector<8x128xf32>, vector<128x384xf32>, vector<8x384xf32> -> vector<8x384xf32>
    %186 = vector.extract_strided_slice %184 {offsets = [0, 0], sizes = [8, 128], strides = [1, 1]} : vector<8x384xf32> to vector<8x128xf32>
    %187 = vector.extract_strided_slice %185 {offsets = [0, 0], sizes = [8, 128], strides = [1, 1]} : vector<8x384xf32> to vector<8x128xf32>
    %188 = arith.addf %186, %187 : vector<8x128xf32>
    %189 = arith.negf %188 : vector<8x128xf32>
    %190 = math.exp %189 : vector<8x128xf32>
    %cst_55 = arith.constant 1.000000e+00 : f32
    %191 = vector.broadcast %cst_55 : f32 to vector<8x128xf32>
    %192 = arith.addf %191, %190 : vector<8x128xf32>
    %193 = arith.divf %191, %192 : vector<8x128xf32>
    %194 = vector.extract_strided_slice %184 {offsets = [0, 128], sizes = [8, 128], strides = [1, 1]} : vector<8x384xf32> to vector<8x128xf32>
    %195 = vector.extract_strided_slice %185 {offsets = [0, 128], sizes = [8, 128], strides = [1, 1]} : vector<8x384xf32> to vector<8x128xf32>
    %196 = arith.addf %194, %195 : vector<8x128xf32>
    %197 = arith.negf %196 : vector<8x128xf32>
    %198 = math.exp %197 : vector<8x128xf32>
    %cst_56 = arith.constant 1.000000e+00 : f32
    %199 = vector.broadcast %cst_56 : f32 to vector<8x128xf32>
    %200 = arith.addf %199, %198 : vector<8x128xf32>
    %201 = arith.divf %199, %200 : vector<8x128xf32>
    %202 = vector.extract_strided_slice %184 {offsets = [0, 256], sizes = [8, 128], strides = [1, 1]} : vector<8x384xf32> to vector<8x128xf32>
    %203 = vector.extract_strided_slice %185 {offsets = [0, 256], sizes = [8, 128], strides = [1, 1]} : vector<8x384xf32> to vector<8x128xf32>
    %204 = arith.addf %203, %14 : vector<8x128xf32>
    %205 = arith.mulf %193, %204 : vector<8x128xf32>
    %206 = arith.addf %202, %205 : vector<8x128xf32>
    %207 = math.tanh %206 : vector<8x128xf32>
    %208 = arith.subf %177, %207 : vector<8x128xf32>
    %209 = arith.mulf %201, %208 : vector<8x128xf32>
    %210 = arith.addf %207, %209 : vector<8x128xf32>
    %211 = arith.index_cast %c5_i32 : i32 to index
    %c0_57 = arith.constant 0 : index
    %c0_58 = arith.constant 0 : index
    %212 = vector.load %arg7[%211, %c0_57, %c0_58] : memref<8x8x128xf32, #tpu.memory_space<vmem>>, vector<1x8x128xf32>
    %213 = vector.shape_cast %212 : vector<1x8x128xf32> to vector<8x128xf32>
    %214 = vector.shape_cast %210 : vector<8x128xf32> to vector<1x8x128xf32>
    tpu.vector_store %arg7[%211, %c0_57, %c0_58], %214 {strides = array<i32>} : memref<8x8x128xf32, #tpu.memory_space<vmem>>, vector<1x8x128xf32>,
    %c6_i32 = arith.constant 6 : i32
    %215 = arith.index_cast %c6_i32 : i32 to index
    %c0_59 = arith.constant 0 : index
    %c0_60 = arith.constant 0 : index
    %216 = vector.load %arg9[%215, %c0_59, %c0_60] : memref<8x8x384xf32, #tpu.memory_space<vmem>>, vector<1x8x384xf32>
    %217 = vector.shape_cast %216 : vector<1x8x384xf32> to vector<8x384xf32>
    %cst_61 = arith.constant dense<0.000000e+00> : vector<8x384xf32>
    %218 = tpu.matmul %210, %15, %cst_61 {dimension_numbers = #tpu.dot_dimension_numbers<[1], [0], [0], [1], [0, 0, 1, 1], [], []>} : vector<8x128xf32>, vector<128x384xf32>, vector<8x384xf32> -> vector<8x384xf32>
    %219 = vector.extract_strided_slice %217 {offsets = [0, 0], sizes = [8, 128], strides = [1, 1]} : vector<8x384xf32> to vector<8x128xf32>
    %220 = vector.extract_strided_slice %218 {offsets = [0, 0], sizes = [8, 128], strides = [1, 1]} : vector<8x384xf32> to vector<8x128xf32>
    %221 = arith.addf %219, %220 : vector<8x128xf32>
    %222 = arith.negf %221 : vector<8x128xf32>
    %223 = math.exp %222 : vector<8x128xf32>
    %cst_62 = arith.constant 1.000000e+00 : f32
    %224 = vector.broadcast %cst_62 : f32 to vector<8x128xf32>
    %225 = arith.addf %224, %223 : vector<8x128xf32>
    %226 = arith.divf %224, %225 : vector<8x128xf32>
    %227 = vector.extract_strided_slice %217 {offsets = [0, 128], sizes = [8, 128], strides = [1, 1]} : vector<8x384xf32> to vector<8x128xf32>
    %228 = vector.extract_strided_slice %218 {offsets = [0, 128], sizes = [8, 128], strides = [1, 1]} : vector<8x384xf32> to vector<8x128xf32>
    %229 = arith.addf %227, %228 : vector<8x128xf32>
    %230 = arith.negf %229 : vector<8x128xf32>
    %231 = math.exp %230 : vector<8x128xf32>
    %cst_63 = arith.constant 1.000000e+00 : f32
    %232 = vector.broadcast %cst_63 : f32 to vector<8x128xf32>
    %233 = arith.addf %232, %231 : vector<8x128xf32>
    %234 = arith.divf %232, %233 : vector<8x128xf32>
    %235 = vector.extract_strided_slice %217 {offsets = [0, 256], sizes = [8, 128], strides = [1, 1]} : vector<8x384xf32> to vector<8x128xf32>
    %236 = vector.extract_strided_slice %218 {offsets = [0, 256], sizes = [8, 128], strides = [1, 1]} : vector<8x384xf32> to vector<8x128xf32>
    %237 = arith.addf %236, %14 : vector<8x128xf32>
    %238 = arith.mulf %226, %237 : vector<8x128xf32>
    %239 = arith.addf %235, %238 : vector<8x128xf32>
    %240 = math.tanh %239 : vector<8x128xf32>
    %241 = arith.subf %210, %240 : vector<8x128xf32>
    %242 = arith.mulf %234, %241 : vector<8x128xf32>
    %243 = arith.addf %240, %242 : vector<8x128xf32>
    %244 = arith.index_cast %c6_i32 : i32 to index
    %c0_64 = arith.constant 0 : index
    %c0_65 = arith.constant 0 : index
    %245 = vector.load %arg7[%244, %c0_64, %c0_65] : memref<8x8x128xf32, #tpu.memory_space<vmem>>, vector<1x8x128xf32>
    %246 = vector.shape_cast %245 : vector<1x8x128xf32> to vector<8x128xf32>
    %247 = vector.shape_cast %243 : vector<8x128xf32> to vector<1x8x128xf32>
    tpu.vector_store %arg7[%244, %c0_64, %c0_65], %247 {strides = array<i32>} : memref<8x8x128xf32, #tpu.memory_space<vmem>>, vector<1x8x128xf32>,
    %c7_i32 = arith.constant 7 : i32
    %248 = arith.index_cast %c7_i32 : i32 to index
    %c0_66 = arith.constant 0 : index
    %c0_67 = arith.constant 0 : index
    %249 = vector.load %arg9[%248, %c0_66, %c0_67] : memref<8x8x384xf32, #tpu.memory_space<vmem>>, vector<1x8x384xf32>
    %250 = vector.shape_cast %249 : vector<1x8x384xf32> to vector<8x384xf32>
    %cst_68 = arith.constant dense<0.000000e+00> : vector<8x384xf32>
    %251 = tpu.matmul %243, %15, %cst_68 {dimension_numbers = #tpu.dot_dimension_numbers<[1], [0], [0], [1], [0, 0, 1, 1], [], []>} : vector<8x128xf32>, vector<128x384xf32>, vector<8x384xf32> -> vector<8x384xf32>
    %252 = vector.extract_strided_slice %250 {offsets = [0, 0], sizes = [8, 128], strides = [1, 1]} : vector<8x384xf32> to vector<8x128xf32>
    %253 = vector.extract_strided_slice %251 {offsets = [0, 0], sizes = [8, 128], strides = [1, 1]} : vector<8x384xf32> to vector<8x128xf32>
    %254 = arith.addf %252, %253 : vector<8x128xf32>
    %255 = arith.negf %254 : vector<8x128xf32>
    %256 = math.exp %255 : vector<8x128xf32>
    %cst_69 = arith.constant 1.000000e+00 : f32
    %257 = vector.broadcast %cst_69 : f32 to vector<8x128xf32>
    %258 = arith.addf %257, %256 : vector<8x128xf32>
    %259 = arith.divf %257, %258 : vector<8x128xf32>
    %260 = vector.extract_strided_slice %250 {offsets = [0, 128], sizes = [8, 128], strides = [1, 1]} : vector<8x384xf32> to vector<8x128xf32>
    %261 = vector.extract_strided_slice %251 {offsets = [0, 128], sizes = [8, 128], strides = [1, 1]} : vector<8x384xf32> to vector<8x128xf32>
    %262 = arith.addf %260, %261 : vector<8x128xf32>
    %263 = arith.negf %262 : vector<8x128xf32>
    %264 = math.exp %263 : vector<8x128xf32>
    %cst_70 = arith.constant 1.000000e+00 : f32
    %265 = vector.broadcast %cst_70 : f32 to vector<8x128xf32>
    %266 = arith.addf %265, %264 : vector<8x128xf32>
    %267 = arith.divf %265, %266 : vector<8x128xf32>
    %268 = vector.extract_strided_slice %250 {offsets = [0, 256], sizes = [8, 128], strides = [1, 1]} : vector<8x384xf32> to vector<8x128xf32>
    %269 = vector.extract_strided_slice %251 {offsets = [0, 256], sizes = [8, 128], strides = [1, 1]} : vector<8x384xf32> to vector<8x128xf32>
    %270 = arith.addf %269, %14 : vector<8x128xf32>
    %271 = arith.mulf %259, %270 : vector<8x128xf32>
    %272 = arith.addf %268, %271 : vector<8x128xf32>
    %273 = math.tanh %272 : vector<8x128xf32>
    %274 = arith.subf %243, %273 : vector<8x128xf32>
    %275 = arith.mulf %267, %274 : vector<8x128xf32>
    %276 = arith.addf %273, %275 : vector<8x128xf32>
    %277 = arith.index_cast %c7_i32 : i32 to index
    %c0_71 = arith.constant 0 : index
    %c0_72 = arith.constant 0 : index
    %278 = vector.load %arg7[%277, %c0_71, %c0_72] : memref<8x8x128xf32, #tpu.memory_space<vmem>>, vector<1x8x128xf32>
    %279 = vector.shape_cast %278 : vector<1x8x128xf32> to vector<8x128xf32>
    %280 = vector.shape_cast %276 : vector<8x128xf32> to vector<1x8x128xf32>
    tpu.vector_store %arg7[%277, %c0_71, %c0_72], %280 {strides = array<i32>} : memref<8x8x128xf32, #tpu.memory_space<vmem>>, vector<1x8x128xf32>,
    %c8_i32 = arith.constant 8 : i32
    %c0_73 = arith.constant 0 : index
    %c0_74 = arith.constant 0 : index
    %281 = vector.load %arg8[%c0_73, %c0_74] : memref<8x128xf32, #tpu.memory_space<vmem>>, vector<8x128xf32>
    tpu.vector_store %arg8[%c0_73, %c0_74], %276 {strides = array<i32>} : memref<8x128xf32, #tpu.memory_space<vmem>>, vector<8x128xf32>,
    return
  }
  func.func @transform_0(%arg0: i32, %arg1: i32) -> (i32, i32, i32) {
    %c0_i32 = arith.constant 0 : i32
    %c0_i32_0 = arith.constant 0 : i32
    return %arg1, %arg0, %c0_i32 : i32, i32, i32
  }
  func.func @transform_1(%arg0: i32, %arg1: i32) -> (i32, i32) {
    %c0_i32 = arith.constant 0 : i32
    %c0_i32_0 = arith.constant 0 : i32
    %c0_i32_1 = arith.constant 0 : i32
    return %c0_i32, %c0_i32_0 : i32, i32
  }
  func.func @transform_2(%arg0: i32, %arg1: i32) -> (i32, i32) {
    %c0_i32 = arith.constant 0 : i32
    %c0_i32_0 = arith.constant 0 : i32
    %c0_i32_1 = arith.constant 0 : i32
    return %c0_i32, %c0_i32_0 : i32, i32
  }
  func.func @transform_3(%arg0: i32, %arg1: i32) -> (i32, i32) {
    %c0_i32 = arith.constant 0 : i32
    %c0_i32_0 = arith.constant 0 : i32
    %c0_i32_1 = arith.constant 0 : i32
    return %c0_i32, %c0_i32_0 : i32, i32
  }
  func.func @transform_4(%arg0: i32, %arg1: i32) -> (i32, i32) {
    %c0_i32 = arith.constant 0 : i32
    %c0_i32_0 = arith.constant 0 : i32
    %c0_i32_1 = arith.constant 0 : i32
    return %c0_i32, %c0_i32_0 : i32, i32
  }
  func.func @transform_5(%arg0: i32, %arg1: i32) -> (i32, i32, i32) {
    %c0_i32 = arith.constant 0 : i32
    %c0_i32_0 = arith.constant 0 : i32
    return %arg1, %arg0, %c0_i32 : i32, i32, i32
  }
}

</mosaic_0001>

<llo_original>
// kernel: tpu_custom_call.1
$region0: #{tpu_custom_call.1}
  #allocation0 [shape = 'u32[]', space=smem, size = 0x4, offset = 0x4, fixed_abs, tag = 'smem constant byte address 0x4 - core index']
  #allocation1 [shape = 'u32[144,128]{1,0:T(1,128)}', space=vmem, size = 0x12000, scoped, tag = 'internal scratch']
  #allocation2 [shape = 'f32[8,128]{1,0:T(8,128)}', space=vmem, size = 0x1000, scoped, tag = 'scratch operand']
  #allocation3 [shape = 'f32[8,8,384]{2,1,0:T(8,128)}', space=vmem, size = 0x18000, scoped, tag = 'scratch operand']
  %s0 = inlined_call_operand.hbm [shape: f32[8,8,128], index: 0, kind: input, shape index: {}]
  %s1 = inlined_call_operand.hbm [shape: f32[128,384], index: 1, kind: input, shape index: {}]
  %s2 = inlined_call_operand.vmem [shape: f32[1,384], index: 2, kind: input, shape index: {}]
  %s3 = inlined_call_operand.hbm [shape: f32[128,384], index: 3, kind: input, shape index: {}]
  %s4 = inlined_call_operand.vmem [shape: f32[1,128], index: 4, kind: input, shape index: {}]
  %s5 = inlined_call_operand.hbm [shape: f32[8,8,128], index: 5, kind: output, shape index: {}]
  %s6 = sld [smem:[#allocation0]]
  $region46: #{tpu_custom_call.1} parent=0
    _
  %s8 = ssub.s32 1, %s6
  %s9 = scalar_select 0, %s8, %s6
  $region1: #{tpu_custom_call.1} parent=0
    #allocation4 [shape = 'u8[32768]{0}', space=vmem, size = 0x8000, scoped, tag = 'input window, operand 0, single buffered']
    #allocation5 [shape = 's32[1]{0}', space=sflag, size = 0x4, scoped, tag = 'scoped memory for tpu_custom_call.1']
    #allocation6 [shape = 's32[1]{0}', space=sflag, size = 0x4, scoped, tag = 'scoped memory for tpu_custom_call.1']
    #allocation7 [shape = 'u8[196608]{0}', space=vmem, size = 0x30000, scoped, tag = 'input window, operand 1, single buffered']
    #allocation8 [shape = 's32[1]{0}', space=sflag, size = 0x4, scoped, tag = 'scoped memory for tpu_custom_call.1']
    #allocation9 [shape = 'u8[196608]{0}', space=vmem, size = 0x30000, scoped, tag = 'input window, operand 3, single buffered']
    #allocation10 [shape = 'u8[32768]{0}', space=vmem, size = 0x8000, scoped, tag = 'output window, operand 0, single buffered']
    %10 = vsyncpa [#allocation5], 0
    %11 = vsyncpa [#allocation8], 0
    %12 = vsyncpa [#allocation6], 0
    // Predicated region
    $region2: #{tpu_custom_call.1} parent=1 // pred_check
      _
    $region3: #{tpu_custom_call.1} parent=1 // pred_check_branch
      %14 = sbr.rel (0) target = $region5
    $region4: #{tpu_custom_call.1} parent=1 // pred_region
      %s16 = ssub.s32 1024, 1024
      %17 = vsyncadd [#allocation5], %s16
      %s18 = sshll.u32 [#allocation4], 4
      %s19 = int_to_ptr.vmem [resolvable:$true] %s18
      %24 = dma.hbm_to_vmem [thread:$0]  %s0, 1024, %s19, [#allocation5], 128, 128, 8
    $region5: #{tpu_custom_call.1} parent=1 // pred_fallthru
      _
    // Predicated region
    $region6: #{tpu_custom_call.1} parent=1 // pred_check
      _
    $region7: #{tpu_custom_call.1} parent=1 // pred_check_branch
      %26 = sbr.rel (0) target = $region9
    $region8: #{tpu_custom_call.1} parent=1 // pred_region
      %s28 = ssub.s32 6144, 6144
      %29 = vsyncadd [#allocation8], %s28
      %s30 = sshll.u32 [#allocation7], 4
      %s31 = int_to_ptr.vmem [resolvable:$true] %s30
      %36 = dma.hbm_to_vmem [thread:$0]  %s1, 6144, %s31, [#allocation8], 384, 384, 24
    $region9: #{tpu_custom_call.1} parent=1 // pred_fallthru
      _
    // Predicated region
    $region10: #{tpu_custom_call.1} parent=1 // pred_check
      _
    $region11: #{tpu_custom_call.1} parent=1 // pred_check_branch
      %38 = sbr.rel (0) target = $region13
    $region12: #{tpu_custom_call.1} parent=1 // pred_region
      _
    $region13: #{tpu_custom_call.1} parent=1 // pred_fallthru
      _
    // Predicated region
    $region14: #{tpu_custom_call.1} parent=1 // pred_check
      _
    $region15: #{tpu_custom_call.1} parent=1 // pred_check_branch
      %40 = sbr.rel (0) target = $region17
    $region16: #{tpu_custom_call.1} parent=1 // pred_region
      %s42 = ssub.s32 6144, 6144
      %43 = vsyncadd [#allocation8], %s42
      %s44 = sshll.u32 [#allocation9], 4
      %s45 = int_to_ptr.vmem [resolvable:$true] %s44
      %50 = dma.hbm_to_vmem [thread:$0]  %s3, 6144, %s45, [#allocation8], 384, 384, 24
    $region17: #{tpu_custom_call.1} parent=1 // pred_fallthru
      _
    // Predicated region
    $region18: #{tpu_custom_call.1} parent=1 // pred_check
      _
    $region19: #{tpu_custom_call.1} parent=1 // pred_check_branch
      %52 = sbr.rel (0) target = $region21
    $region20: #{tpu_custom_call.1} parent=1 // pred_region
      _
    $region21: #{tpu_custom_call.1} parent=1 // pred_fallthru
      _
    // Predicated region
    $region22: #{tpu_custom_call.1} parent=1 // pred_check
      _
    $region23: #{tpu_custom_call.1} parent=1 // pred_check_branch
      %54 = sbr.rel (0) target = $region25
    $region24: #{tpu_custom_call.1} parent=1 // pred_region
      %55 = dma.done [#allocation5], 1024
    $region25: #{tpu_custom_call.1} parent=1 // pred_fallthru
      _
    // Predicated region
    $region26: #{tpu_custom_call.1} parent=1 // pred_check
      _
    $region27: #{tpu_custom_call.1} parent=1 // pred_check_branch
      %57 = sbr.rel (0) target = $region29
    $region28: #{tpu_custom_call.1} parent=1 // pred_region
      %58 = dma.done [#allocation8], 6144
    $region29: #{tpu_custom_call.1} parent=1 // pred_fallthru
      _
    // Predicated region
    $region30: #{tpu_custom_call.1} parent=1 // pred_check
      _
    $region31: #{tpu_custom_call.1} parent=1 // pred_check_branch
      %60 = sbr.rel (0) target = $region33
    $region32: #{tpu_custom_call.1} parent=1 // pred_region
      %61 = dma.done [#allocation8], 6144
    $region33: #{tpu_custom_call.1} parent=1 // pred_fallthru
      _
    %p62 = scmp.eq.s32.totalorder 0, 0
    // Predicated region
    $region34: #{tpu_custom_call.1} parent=1 // pred_check
      %p63 = pneg %p62
    $region35: #{tpu_custom_call.1} parent=1 // pred_check_branch
      %65 = sbr.rel (%p63) target = $region37
    $region36: #{tpu_custom_call.1} parent=1 // pred_region
      %66 = vst [vmem:[#allocation2] sm:$0xff] 0.0
    $region37: #{tpu_custom_call.1} parent=1 // pred_fallthru
      _
    %v67 = vld [vmem:[#allocation4] sm:$0xff]
    %v68 = vld [vmem:[#allocation4 + $0x8] sm:$0xff]
    %v69 = vld [vmem:[#allocation4 + $0x10] sm:$0xff]
    %v70 = vld [vmem:[#allocation4 + $0x18] sm:$0xff]
    %v71 = vld [vmem:[#allocation4 + $0x20] sm:$0xff]
    %v72 = vld [vmem:[#allocation4 + $0x28] sm:$0xff]
    %v73 = vld [vmem:[#allocation4 + $0x30] sm:$0xff]
    %v74 = vld [vmem:[#allocation4 + $0x38] sm:$0xff]
    %v75 = vld [vmem:[#allocation7] sm:$0xff]
    %v76 = vld [vmem:[#allocation7 + $0x8] sm:$0xff]
    %v77 = vld [vmem:[#allocation7 + $0x10] sm:$0xff]
    %v78 = vld [vmem:[#allocation7 + $0x18] sm:$0xff]
    %v79 = vld [vmem:[#allocation7 + $0x20] sm:$0xff]
    %v80 = vld [vmem:[#allocation7 + $0x28] sm:$0xff]
    %v81 = vld [vmem:[#allocation7 + $0x30] sm:$0xff]
    %v82 = vld [vmem:[#allocation7 + $0x38] sm:$0xff]
    %v83 = vld [vmem:[#allocation7 + $0x40] sm:$0xff]
    %v84 = vld [vmem:[#allocation7 + $0x48] sm:$0xff]
    %v85 = vld [vmem:[#allocation7 + $0x50] sm:$0xff]
    %v86 = vld [vmem:[#allocation7 + $0x58] sm:$0xff]
    %v87 = vld [vmem:[#allocation7 + $0x60] sm:$0xff]
    %v88 = vld [vmem:[#allocation7 + $0x68] sm:$0xff]
    %v89 = vld [vmem:[#allocation7 + $0x70] sm:$0xff]
    %v90 = vld [vmem:[#allocation7 + $0x78] sm:$0xff]
    %v91 = vld [vmem:[#allocation7 + $0x80] sm:$0xff]
    %v92 = vld [vmem:[#allocation7 + $0x88] sm:$0xff]
    %v93 = vld [vmem:[#allocation7 + $0x90] sm:$0xff]
    %v94 = vld [vmem:[#allocation7 + $0x98] sm:$0xff]
    %v95 = vld [vmem:[#allocation7 + $0xa0] sm:$0xff]
    %v96 = vld [vmem:[#allocation7 + $0xa8] sm:$0xff]
    %v97 = vld [vmem:[#allocation7 + $0xb0] sm:$0xff]
    %v98 = vld [vmem:[#allocation7 + $0xb8] sm:$0xff]
    %v99 = vld [vmem:[#allocation7 + $0xc0] sm:$0xff]
    %v100 = vld [vmem:[#allocation7 + $0xc8] sm:$0xff]
    %v101 = vld [vmem:[#allocation7 + $0xd0] sm:$0xff]
    %v102 = vld [vmem:[#allocation7 + $0xd8] sm:$0xff]
    %v103 = vld [vmem:[#allocation7 + $0xe0] sm:$0xff]
    %v104 = vld [vmem:[#allocation7 + $0xe8] sm:$0xff]
    %v105 = vld [vmem:[#allocation7 + $0xf0] sm:$0xff]
    %v106 = vld [vmem:[#allocation7 + $0xf8] sm:$0xff]
    %v107 = vld [vmem:[#allocation7 + $0x100] sm:$0xff]
    %v108 = vld [vmem:[#allocation7 + $0x108] sm:$0xff]
    %v109 = vld [vmem:[#allocation7 + $0x110] sm:$0xff]
    %v110 = vld [vmem:[#allocation7 + $0x118] sm:$0xff]
    %v111 = vld [vmem:[#allocation7 + $0x120] sm:$0xff]
    %v112 = vld [vmem:[#allocation7 + $0x128] sm:$0xff]
    %v113 = vld [vmem:[#allocation7 + $0x130] sm:$0xff]
    %v114 = vld [vmem:[#allocation7 + $0x138] sm:$0xff]
    %v115 = vld [vmem:[#allocation7 + $0x140] sm:$0xff]
    %v116 = vld [vmem:[#allocation7 + $0x148] sm:$0xff]
    %v117 = vld [vmem:[#allocation7 + $0x150] sm:$0xff]
    %v118 = vld [vmem:[#allocation7 + $0x158] sm:$0xff]
    %v119 = vld [vmem:[#allocation7 + $0x160] sm:$0xff]
    %v120 = vld [vmem:[#allocation7 + $0x168] sm:$0xff]
    %v121 = vld [vmem:[#allocation7 + $0x170] sm:$0xff]
    %v122 = vld [vmem:[#allocation7 + $0x178] sm:$0xff]
    %v123 = vld [vmem:[%s2] sm:$0x7]
    %v125 = vlaneseq
    %v126 = vshrl.u32 %v125, 7
    %v127 = vsub.s32 0, %v126
    %v128 = vrot.slane %v123, %v127
    %v129 = vlaneseq
    %v130 = vshrl.u32 %v129, 7
    %v131 = vsub.s32 1, %v130
    %v132 = vrot.slane %v123, %v131
    %v133 = vlaneseq
    %v134 = vshrl.u32 %v133, 7
    %v135 = vsub.s32 2, %v134
    %v136 = vrot.slane %v123, %v135
    %140 = vmatprep.subr.mxu0 %v121
    %141 = vmatpush1.msra.mxu0 %v120
    %142 = vmatprep.subr.mxu0 %v118
    %143 = vmatpush1.msra.mxu0 %v117
    %144 = vmatprep.subr.mxu0 %v115
    %145 = vmatpush1.msra.mxu0 %v114
    %146 = vmatprep.subr.mxu0 %v112
    %147 = vmatpush1.msra.mxu0 %v111
    %148 = vmatprep.subr.mxu0 %v109
    %149 = vmatpush1.msra.mxu0 %v108
    %150 = vmatprep.subr.mxu0 %v106
    %151 = vmatpush1.msra.mxu0 %v105
    %152 = vmatprep.subr.mxu0 %v103
    %153 = vmatpush1.msra.mxu0 %v102
    %154 = vmatprep.subr.mxu0 %v100
    %155 = vmatpush1.msra.mxu0 %v99
    %156 = vmatprep.subr.mxu0 %v97
    %157 = vmatpush1.msra.mxu0 %v96
    %158 = vmatprep.subr.mxu0 %v94
    %159 = vmatpush1.msra.mxu0 %v93
    %160 = vmatprep.subr.mxu0 %v91
    %161 = vmatpush1.msra.mxu0 %v90
    %162 = vmatprep.subr.mxu0 %v88
    %163 = vmatpush1.msra.mxu0 %v87
    %164 = vmatprep.subr.mxu0 %v85
    %165 = vmatpush1.msra.mxu0 %v84
    %166 = vmatprep.subr.mxu0 %v82
    %167 = vmatpush1.msra.mxu0 %v81
    %168 = vmatprep.subr.mxu0 %v79
    %169 = vmatpush1.msra.mxu0 %v78
    %170 = vmatprep.subr.mxu0 %v76
    %171 = vmatpush1.msra.mxu0 %v75
    %172 = vmatprep.subr.mxu0 0.0
    %173 = vmatpush2.msra.mxu0 0.0
    %174 = vmatprep.subr.mxu0 0.0
    %175 = vmatpush2.msra.mxu0 0.0
    %176 = vmatprep.subr.mxu0 0.0
    %177 = vmatpush2.msra.mxu0 0.0
    %178 = vmatprep.subr.mxu0 0.0
    %179 = vmatpush2.msra.mxu0 0.0
    %180 = vmatprep.subr.mxu0 0.0
    %181 = vmatpush2.msra.mxu0 0.0
    %182 = vmatprep.subr.mxu0 0.0
    %183 = vmatpush2.msra.mxu0 0.0
    %184 = vmatprep.subr.mxu0 0.0
    %185 = vmatpush2.msra.mxu0 0.0
    %186 = vmatprep.subr.mxu0 0.0
    %187 = vmatpush2.msra.mxu0 0.0
    %188 = vmatprep.subr.mxu0 0.0
    %189 = vmatpush2.msra.mxu0 0.0
    %190 = vmatprep.subr.mxu0 0.0
    %191 = vmatpush2.msra.mxu0 0.0
    %192 = vmatprep.subr.mxu0 0.0
    %193 = vmatpush2.msra.mxu0 0.0
    %194 = vmatprep.subr.mxu0 0.0
    %195 = vmatpush2.msra.mxu0 0.0
    %196 = vmatprep.subr.mxu0 0.0
    %197 = vmatpush2.msra.mxu0 0.0
    %198 = vmatprep.subr.mxu0 0.0
    %199 = vmatpush2.msra.mxu0 0.0
    %200 = vmatprep.subr.mxu0 0.0
    %201 = vmatpush2.msra.mxu0 0.0
    %202 = vmatprep.subr.mxu0 0.0
    %203 = vmatpush2.msra.mxu0 0.0
    %204 = vmatprep.mubr.f32.mxu0 0.0
    %205 = vmatmul.mubr.f32.gmra.mxu0 %v67
    %v206 = vpop.f32.mrf.mxu0
    %v207 = vadd.f32 %v128, %v206
    %v208 = vpop.f32.mrf.mxu0
    %v209 = vadd.f32 %v132, %v208
    %210 = vmatprep.mubr.f32.mxu0 0.0
    %211 = vmatmul.mubr.f32.gmra.mxu0 %v68
    %v212 = vpop.f32.mrf.mxu0
    %v213 = vadd.f32 %v128, %v212
    %v214 = vpop.f32.mrf.mxu0
    %v215 = vadd.f32 %v132, %v214
    %216 = vmatprep.mubr.f32.mxu0 0.0
    %217 = vmatmul.mubr.f32.gmra.mxu0 %v69
    %v218 = vpop.f32.mrf.mxu0
    %v219 = vadd.f32 %v128, %v218
    %v220 = vpop.f32.mrf.mxu0
    %v221 = vadd.f32 %v132, %v220
    %222 = vmatprep.mubr.f32.mxu0 0.0
    %223 = vmatmul.mubr.f32.gmra.mxu0 %v70
    %v224 = vpop.f32.mrf.mxu0
    %v225 = vadd.f32 %v128, %v224
    %v226 = vpop.f32.mrf.mxu0
    %v227 = vadd.f32 %v132, %v226
    %228 = vmatprep.mubr.f32.mxu0 0.0
    %229 = vmatmul.mubr.f32.gmra.mxu0 %v71
    %v230 = vpop.f32.mrf.mxu0
    %v231 = vadd.f32 %v128, %v230
    %v232 = vpop.f32.mrf.mxu0
    %v233 = vadd.f32 %v132, %v232
    %234 = vmatprep.mubr.f32.mxu0 0.0
    %235 = vmatmul.mubr.f32.gmra.mxu0 %v72
    %v236 = vpop.f32.mrf.mxu0
    %v237 = vadd.f32 %v128, %v236
    %v238 = vpop.f32.mrf.mxu0
    %v239 = vadd.f32 %v132, %v238
    %240 = vmatprep.mubr.f32.mxu0 0.0
    %241 = vmatmul.mubr.f32.gmra.mxu0 %v73
    %v242 = vpop.f32.mrf.mxu0
    %v243 = vadd.f32 %v128, %v242
    %v244 = vpop.f32.mrf.mxu0
    %v245 = vadd.f32 %v132, %v244
    %246 = vmatprep.mubr.f32.mxu0 0.0
    %247 = vmatmul.mubr.f32.gmra.mxu0 %v74
    %v248 = vpop.f32.mrf.mxu0
    %v249 = vadd.f32 %v128, %v248
    %v250 = vpop.f32.mrf.mxu0
    %v251 = vadd.f32 %v132, %v250
    %252 = vdwg.mxu0
    %253 = vmatprep.subr.mxu0 0.0
    %254 = vmatpush1.msra.mxu0 %v122
    %255 = vmatprep.subr.mxu0 0.0
    %256 = vmatpush1.msra.mxu0 %v119
    %257 = vmatprep.subr.mxu0 0.0
    %258 = vmatpush1.msra.mxu0 %v116
    %259 = vmatprep.subr.mxu0 0.0
    %260 = vmatpush1.msra.mxu0 %v113
    %261 = vmatprep.subr.mxu0 0.0
    %262 = vmatpush1.msra.mxu0 %v110
    %263 = vmatprep.subr.mxu0 0.0
    %264 = vmatpush1.msra.mxu0 %v107
    %265 = vmatprep.subr.mxu0 0.0
    %266 = vmatpush1.msra.mxu0 %v104
    %267 = vmatprep.subr.mxu0 0.0
    %268 = vmatpush1.msra.mxu0 %v101
    %269 = vmatprep.subr.mxu0 0.0
    %270 = vmatpush1.msra.mxu0 %v98
    %271 = vmatprep.subr.mxu0 0.0
    %272 = vmatpush1.msra.mxu0 %v95
    %273 = vmatprep.subr.mxu0 0.0
    %274 = vmatpush1.msra.mxu0 %v92
    %275 = vmatprep.subr.mxu0 0.0
    %276 = vmatpush1.msra.mxu0 %v89
    %277 = vmatprep.subr.mxu0 0.0
    %278 = vmatpush1.msra.mxu0 %v86
    %279 = vmatprep.subr.mxu0 0.0
    %280 = vmatpush1.msra.mxu0 %v83
    %281 = vmatprep.subr.mxu0 0.0
    %282 = vmatpush1.msra.mxu0 %v80
    %283 = vmatprep.subr.mxu0 0.0
    %284 = vmatpush1.msra.mxu0 %v77
    %285 = vmatprep.subr.mxu0 0.0
    %286 = vmatpush2.msra.mxu0 0.0
    %287 = vmatprep.subr.mxu0 0.0
    %288 = vmatpush2.msra.mxu0 0.0
    %289 = vmatprep.subr.mxu0 0.0
    %290 = vmatpush2.msra.mxu0 0.0
    %291 = vmatprep.subr.mxu0 0.0
    %292 = vmatpush2.msra.mxu0 0.0
    %293 = vmatprep.subr.mxu0 0.0
    %294 = vmatpush2.msra.mxu0 0.0
    %295 = vmatprep.subr.mxu0 0.0
    %296 = vmatpush2.msra.mxu0 0.0
    %297 = vmatprep.subr.mxu0 0.0
    %298 = vmatpush2.msra.mxu0 0.0
    %299 = vmatprep.subr.mxu0 0.0
    %300 = vmatpush2.msra.mxu0 0.0
    %301 = vmatprep.subr.mxu0 0.0
    %302 = vmatpush2.msra.mxu0 0.0
    %303 = vmatprep.subr.mxu0 0.0
    %304 = vmatpush2.msra.mxu0 0.0
    %305 = vmatprep.subr.mxu0 0.0
    %306 = vmatpush2.msra.mxu0 0.0
    %307 = vmatprep.subr.mxu0 0.0
    %308 = vmatpush2.msra.mxu0 0.0
    %309 = vmatprep.subr.mxu0 0.0
    %310 = vmatpush2.msra.mxu0 0.0
    %311 = vmatprep.subr.mxu0 0.0
    %312 = vmatpush2.msra.mxu0 0.0
    %313 = vmatprep.subr.mxu0 0.0
    %314 = vmatpush2.msra.mxu0 0.0
    %315 = vmatprep.subr.mxu0 0.0
    %316 = vmatpush2.msra.mxu0 0.0
    %317 = vmatprep.mubr.f32.mxu0 0.0
    %318 = vmatmul.mubr.f32.gmra.mxu0 %v67
    %v319 = vpop.f32.mrf.mxu0
    %v320 = vadd.f32 %v136, %v319
    %v321 = vpop.f32.mrf.mxu0
    %322 = vmatprep.mubr.f32.mxu0 0.0
    %323 = vmatmul.mubr.f32.gmra.mxu0 %v68
    %v324 = vpop.f32.mrf.mxu0
    %v325 = vadd.f32 %v136, %v324
    %v326 = vpop.f32.mrf.mxu0
    %327 = vmatprep.mubr.f32.mxu0 0.0
    %328 = vmatmul.mubr.f32.gmra.mxu0 %v69
    %v329 = vpop.f32.mrf.mxu0
    %v330 = vadd.f32 %v136, %v329
    %v331 = vpop.f32.mrf.mxu0
    %332 = vmatprep.mubr.f32.mxu0 0.0
    %333 = vmatmul.mubr.f32.gmra.mxu0 %v70
    %v334 = vpop.f32.mrf.mxu0
    %v335 = vadd.f32 %v136, %v334
    %v336 = vpop.f32.mrf.mxu0
    %337 = vmatprep.mubr.f32.mxu0 0.0
    %338 = vmatmul.mubr.f32.gmra.mxu0 %v71
    %v339 = vpop.f32.mrf.mxu0
    %v340 = vadd.f32 %v136, %v339
    %v341 = vpop.f32.mrf.mxu0
    %342 = vmatprep.mubr.f32.mxu0 0.0
    %343 = vmatmul.mubr.f32.gmra.mxu0 %v72
    %v344 = vpop.f32.mrf.mxu0
    %v345 = vadd.f32 %v136, %v344
    %v346 = vpop.f32.mrf.mxu0
    %347 = vmatprep.mubr.f32.mxu0 0.0
    %348 = vmatmul.mubr.f32.gmra.mxu0 %v73
    %v349 = vpop.f32.mrf.mxu0
    %v350 = vadd.f32 %v136, %v349
    %v351 = vpop.f32.mrf.mxu0
    %352 = vmatprep.mubr.f32.mxu0 0.0
    %353 = vmatmul.mubr.f32.gmra.mxu0 %v74
    %v354 = vpop.f32.mrf.mxu0
    %v355 = vadd.f32 %v136, %v354
    %v356 = vpop.f32.mrf.mxu0
    %357 = vdwg.mxu0
    %358 = vst [vmem:[#allocation3] sm:$0xff] %v207
    %359 = vst [vmem:[#allocation3 + $0x8] sm:$0xff] %v209
    %360 = vst [vmem:[#allocation3 + $0x10] sm:$0xff] %v320
    %361 = vst [vmem:[#allocation3 + $0x18] sm:$0xff] %v213
    %362 = vst [vmem:[#allocation3 + $0x20] sm:$0xff] %v215
    %363 = vst [vmem:[#allocation3 + $0x28] sm:$0xff] %v325
    %364 = vst [vmem:[#allocation3 + $0x30] sm:$0xff] %v219
    %365 = vst [vmem:[#allocation3 + $0x38] sm:$0xff] %v221
    %366 = vst [vmem:[#allocation3 + $0x40] sm:$0xff] %v330
    %367 = vst [vmem:[#allocation3 + $0x48] sm:$0xff] %v225
    %368 = vst [vmem:[#allocation3 + $0x50] sm:$0xff] %v227
    %369 = vst [vmem:[#allocation3 + $0x58] sm:$0xff] %v335
    %370 = vst [vmem:[#allocation3 + $0x60] sm:$0xff] %v231
    %371 = vst [vmem:[#allocation3 + $0x68] sm:$0xff] %v233
    %372 = vst [vmem:[#allocation3 + $0x70] sm:$0xff] %v340
    %373 = vst [vmem:[#allocation3 + $0x78] sm:$0xff] %v237
    %374 = vst [vmem:[#allocation3 + $0x80] sm:$0xff] %v239
    %375 = vst [vmem:[#allocation3 + $0x88] sm:$0xff] %v345
    %376 = vst [vmem:[#allocation3 + $0x90] sm:$0xff] %v243
    %377 = vst [vmem:[#allocation3 + $0x98] sm:$0xff] %v245
    %378 = vst [vmem:[#allocation3 + $0xa0] sm:$0xff] %v350
    %379 = vst [vmem:[#allocation3 + $0xa8] sm:$0xff] %v249
    %380 = vst [vmem:[#allocation3 + $0xb0] sm:$0xff] %v251
    %381 = vst [vmem:[#allocation3 + $0xb8] sm:$0xff] %v355
    %v382 = vld [vmem:[%s4] sm:$0x1]
    %v384 = vlaneseq
    %v385 = vshrl.u32 %v384, 7
    %v386 = vsub.s32 0, %v385
    %v387 = vrot.slane %v382, %v386
    %v389 = vld [vmem:[#allocation9] sm:$0xff]
    %v390 = vld [vmem:[#allocation9 + $0x8] sm:$0xff]
    %v391 = vld [vmem:[#allocation9 + $0x10] sm:$0xff]
    %v392 = vld [vmem:[#allocation9 + $0x18] sm:$0xff]
    %v393 = vld [vmem:[#allocation9 + $0x20] sm:$0xff]
    %v394 = vld [vmem:[#allocation9 + $0x28] sm:$0xff]
    %v395 = vld [vmem:[#allocation9 + $0x30] sm:$0xff]
    %v396 = vld [vmem:[#allocation9 + $0x38] sm:$0xff]
    %v397 = vld [vmem:[#allocation9 + $0x40] sm:$0xff]
    %v398 = vld [vmem:[#allocation9 + $0x48] sm:$0xff]
    %v399 = vld [vmem:[#allocation9 + $0x50] sm:$0xff]
    %v400 = vld [vmem:[#allocation9 + $0x58] sm:$0xff]
    %v401 = vld [vmem:[#allocation9 + $0x60] sm:$0xff]
    %v402 = vld [vmem:[#allocation9 + $0x68] sm:$0xff]
    %v403 = vld [vmem:[#allocation9 + $0x70] sm:$0xff]
    %v404 = vld [vmem:[#allocation9 + $0x78] sm:$0xff]
    %v405 = vld [vmem:[#allocation9 + $0x80] sm:$0xff]
    %v406 = vld [vmem:[#allocation9 + $0x88] sm:$0xff]
    %v407 = vld [vmem:[#allocation9 + $0x90] sm:$0xff]
    %v408 = vld [vmem:[#allocation9 + $0x98] sm:$0xff]
    %v409 = vld [vmem:[#allocation9 + $0xa0] sm:$0xff]
    %v410 = vld [vmem:[#allocation9 + $0xa8] sm:$0xff]
    %v411 = vld [vmem:[#allocation9 + $0xb0] sm:$0xff]
    %v412 = vld [vmem:[#allocation9 + $0xb8] sm:$0xff]
    %v413 = vld [vmem:[#allocation9 + $0xc0] sm:$0xff]
    %v414 = vld [vmem:[#allocation9 + $0xc8] sm:$0xff]
    %v415 = vld [vmem:[#allocation9 + $0xd0] sm:$0xff]
    %v416 = vld [vmem:[#allocation9 + $0xd8] sm:$0xff]
    %v417 = vld [vmem:[#allocation9 + $0xe0] sm:$0xff]
    %v418 = vld [vmem:[#allocation9 + $0xe8] sm:$0xff]
    %v419 = vld [vmem:[#allocation9 + $0xf0] sm:$0xff]
    %v420 = vld [vmem:[#allocation9 + $0xf8] sm:$0xff]
    %v421 = vld [vmem:[#allocation9 + $0x100] sm:$0xff]
    %v422 = vld [vmem:[#allocation9 + $0x108] sm:$0xff]
    %v423 = vld [vmem:[#allocation9 + $0x110] sm:$0xff]
    %v424 = vld [vmem:[#allocation9 + $0x118] sm:$0xff]
    %v425 = vld [vmem:[#allocation9 + $0x120] sm:$0xff]
    %v426 = vld [vmem:[#allocation9 + $0x128] sm:$0xff]
    %v427 = vld [vmem:[#allocation9 + $0x130] sm:$0xff]
    %v428 = vld [vmem:[#allocation9 + $0x138] sm:$0xff]
    %v429 = vld [vmem:[#allocation9 + $0x140] sm:$0xff]
    %v430 = vld [vmem:[#allocation9 + $0x148] sm:$0xff]
    %v431 = vld [vmem:[#allocation9 + $0x150] sm:$0xff]
    %v432 = vld [vmem:[#allocation9 + $0x158] sm:$0xff]
    %v433 = vld [vmem:[#allocation9 + $0x160] sm:$0xff]
    %v434 = vld [vmem:[#allocation9 + $0x168] sm:$0xff]
    %v435 = vld [vmem:[#allocation9 + $0x170] sm:$0xff]
    %v436 = vld [vmem:[#allocation9 + $0x178] sm:$0xff]
    %v437 = vld [vmem:[#allocation2] sm:$0xff]
    %v438 = vld [vmem:[#allocation3] sm:$0xff]
    %v439 = vld [vmem:[#allocation3 + $0x8] sm:$0xff]
    %v440 = vld [vmem:[#allocation3 + $0x10] sm:$0xff]
    %441 = vmatprep.subr.mxu0 %v435
    %442 = vmatpush1.msra.mxu0 %v434
    %443 = vmatprep.subr.mxu0 %v432
    %444 = vmatpush1.msra.mxu0 %v431
    %445 = vmatprep.subr.mxu0 %v429
    %446 = vmatpush1.msra.mxu0 %v428
    %447 = vmatprep.subr.mxu0 %v426
    %448 = vmatpush1.msra.mxu0 %v425
    %449 = vmatprep.subr.mxu0 %v423
    %450 = vmatpush1.msra.mxu0 %v422
    %451 = vmatprep.subr.mxu0 %v420
    %452 = vmatpush1.msra.mxu0 %v419
    %453 = vmatprep.subr.mxu0 %v417
    %454 = vmatpush1.msra.mxu0 %v416
    %455 = vmatprep.subr.mxu0 %v414
    %456 = vmatpush1.msra.mxu0 %v413
    %457 = vmatprep.subr.mxu0 %v411
    %458 = vmatpush1.msra.mxu0 %v410
    %459 = vmatprep.subr.mxu0 %v408
    %460 = vmatpush1.msra.mxu0 %v407
    %461 = vmatprep.subr.mxu0 %v405
    %462 = vmatpush1.msra.mxu0 %v404
    %463 = vmatprep.subr.mxu0 %v402
    %464 = vmatpush1.msra.mxu0 %v401
    %465 = vmatprep.subr.mxu0 %v399
    %466 = vmatpush1.msra.mxu0 %v398
    %467 = vmatprep.subr.mxu0 %v396
    %468 = vmatpush1.msra.mxu0 %v395
    %469 = vmatprep.subr.mxu0 %v393
    %470 = vmatpush1.msra.mxu0 %v392
    %471 = vmatprep.subr.mxu0 %v390
    %472 = vmatpush1.msra.mxu0 %v389
    %473 = vmatprep.subr.mxu0 0.0
    %474 = vmatpush2.msra.mxu0 0.0
    %475 = vmatprep.subr.mxu0 0.0
    %476 = vmatpush2.msra.mxu0 0.0
    %477 = vmatprep.subr.mxu0 0.0
    %478 = vmatpush2.msra.mxu0 0.0
    %479 = vmatprep.subr.mxu0 0.0
    %480 = vmatpush2.msra.mxu0 0.0
    %481 = vmatprep.subr.mxu0 0.0
    %482 = vmatpush2.msra.mxu0 0.0
    %483 = vmatprep.subr.mxu0 0.0
    %484 = vmatpush2.msra.mxu0 0.0
    %485 = vmatprep.subr.mxu0 0.0
    %486 = vmatpush2.msra.mxu0 0.0
    %487 = vmatprep.subr.mxu0 0.0
    %488 = vmatpush2.msra.mxu0 0.0
    %489 = vmatprep.subr.mxu0 0.0
    %490 = vmatpush2.msra.mxu0 0.0
    %491 = vmatprep.subr.mxu0 0.0
    %492 = vmatpush2.msra.mxu0 0.0
    %493 = vmatprep.subr.mxu0 0.0
    %494 = vmatpush2.msra.mxu0 0.0
    %495 = vmatprep.subr.mxu0 0.0
    %496 = vmatpush2.msra.mxu0 0.0
    %497 = vmatprep.subr.mxu0 0.0
    %498 = vmatpush2.msra.mxu0 0.0
    %499 = vmatprep.subr.mxu0 0.0
    %500 = vmatpush2.msra.mxu0 0.0
    %501 = vmatprep.subr.mxu0 0.0
    %502 = vmatpush2.msra.mxu0 0.0
    %503 = vmatprep.subr.mxu0 0.0
    %504 = vmatpush2.msra.mxu0 0.0
    %505 = vmatprep.mubr.f32.mxu0 0.0
    %506 = vmatmul.mubr.f32.gmra.mxu0 %v437
    %v507 = vpop.f32.mrf.mxu0
    %v508 = vadd.f32 0.0, %v507
    %v509 = vpop.f32.mrf.mxu0
    %v510 = vadd.f32 0.0, %v509
    %511 = vdwg.mxu0
    %512 = vmatprep.subr.mxu0 0.0
    %513 = vmatpush1.msra.mxu0 %v436
    %514 = vmatprep.subr.mxu0 0.0
    %515 = vmatpush1.msra.mxu0 %v433
    %516 = vmatprep.subr.mxu0 0.0
    %517 = vmatpush1.msra.mxu0 %v430
    %518 = vmatprep.subr.mxu0 0.0
    %519 = vmatpush1.msra.mxu0 %v427
    %520 = vmatprep.subr.mxu0 0.0
    %521 = vmatpush1.msra.mxu0 %v424
    %522 = vmatprep.subr.mxu0 0.0
    %523 = vmatpush1.msra.mxu0 %v421
    %524 = vmatprep.subr.mxu0 0.0
    %525 = vmatpush1.msra.mxu0 %v418
    %526 = vmatprep.subr.mxu0 0.0
    %527 = vmatpush1.msra.mxu0 %v415
    %528 = vmatprep.subr.mxu0 0.0
    %529 = vmatpush1.msra.mxu0 %v412
    %530 = vmatprep.subr.mxu0 0.0
    %531 = vmatpush1.msra.mxu0 %v409
    %532 = vmatprep.subr.mxu0 0.0
    %533 = vmatpush1.msra.mxu0 %v406
    %534 = vmatprep.subr.mxu0 0.0
    %535 = vmatpush1.msra.mxu0 %v403
    %536 = vmatprep.subr.mxu0 0.0
    %537 = vmatpush1.msra.mxu0 %v400
    %538 = vmatprep.subr.mxu0 0.0
    %539 = vmatpush1.msra.mxu0 %v397
    %540 = vmatprep.subr.mxu0 0.0
    %541 = vmatpush1.msra.mxu0 %v394
    %542 = vmatprep.subr.mxu0 0.0
    %543 = vmatpush1.msra.mxu0 %v391
    %544 = vmatprep.subr.mxu0 0.0
    %545 = vmatpush2.msra.mxu0 0.0
    %546 = vmatprep.subr.mxu0 0.0
    %547 = vmatpush2.msra.mxu0 0.0
    %548 = vmatprep.subr.mxu0 0.0
    %549 = vmatpush2.msra.mxu0 0.0
    %550 = vmatprep.subr.mxu0 0.0
    %551 = vmatpush2.msra.mxu0 0.0
    %552 = vmatprep.subr.mxu0 0.0
    %553 = vmatpush2.msra.mxu0 0.0
    %554 = vmatprep.subr.mxu0 0.0
    %555 = vmatpush2.msra.mxu0 0.0
    %556 = vmatprep.subr.mxu0 0.0
    %557 = vmatpush2.msra.mxu0 0.0
    %558 = vmatprep.subr.mxu0 0.0
    %559 = vmatpush2.msra.mxu0 0.0
    %560 = vmatprep.subr.mxu0 0.0
    %561 = vmatpush2.msra.mxu0 0.0
    %562 = vmatprep.subr.mxu0 0.0
    %563 = vmatpush2.msra.mxu0 0.0
    %564 = vmatprep.subr.mxu0 0.0
    %565 = vmatpush2.msra.mxu0 0.0
    %566 = vmatprep.subr.mxu0 0.0
    %567 = vmatpush2.msra.mxu0 0.0
    %568 = vmatprep.subr.mxu0 0.0
    %569 = vmatpush2.msra.mxu0 0.0
    %570 = vmatprep.subr.mxu0 0.0
    %571 = vmatpush2.msra.mxu0 0.0
    %572 = vmatprep.subr.mxu0 0.0
    %573 = vmatpush2.msra.mxu0 0.0
    %574 = vmatprep.subr.mxu0 0.0
    %575 = vmatpush2.msra.mxu0 0.0
    %576 = vmatprep.mubr.f32.mxu0 0.0
    %577 = vmatmul.mubr.f32.gmra.mxu0 %v437
    %v578 = vpop.f32.mrf.mxu0
    %v579 = vadd.f32 0.0, %v578
    %v580 = vpop.f32.mrf.mxu0
    %581 = vdwg.mxu0
    %v582 = vadd.f32 %v438, %v508
    %v583 = vxor.u32 %v582, 2147483648
    %v584 = vmul.f32 %v583, 1.442695
    %v585 = vpow.pop %v584
    %v586 = vadd.f32 %v585, 1.0
    %v587 = vrcp.pop %v586
    %v588 = vmul.f32 1.0, %v587
    %v589 = vadd.f32 %v439, %v510
    %v590 = vxor.u32 %v589, 2147483648
    %v591 = vmul.f32 %v590, 1.442695
    %v592 = vpow.pop %v591
    %v593 = vadd.f32 %v592, 1.0
    %v594 = vrcp.pop %v593
    %v595 = vmul.f32 1.0, %v594
    %v596 = vadd.f32 %v579, %v387
    %v597 = vmul.f32 %v588, %v596
    %v598 = vadd.f32 %v440, %v597
    %v599 = vtanh.pop %v598
    %v600 = vsub.f32 %v437, %v599
    %v601 = vmul.f32 %v595, %v600
    %v602 = vadd.f32 %v599, %v601
    %603 = vst [vmem:[#allocation10] sm:$0xff] %v602
    %s604 = scalar_lea.vmem [#allocation3], 24
    %v605 = vld [vmem:[%s604] sm:$0xff]
    %v606 = vld [vmem:[%s604 + $0x8] sm:$0xff]
    %v607 = vld [vmem:[%s604 + $0x10] sm:$0xff]
    %608 = vmatprep.subr.mxu0 %v435
    %609 = vmatpush1.msra.mxu0 %v434
    %610 = vmatprep.subr.mxu0 %v432
    %611 = vmatpush1.msra.mxu0 %v431
    %612 = vmatprep.subr.mxu0 %v429
    %613 = vmatpush1.msra.mxu0 %v428
    %614 = vmatprep.subr.mxu0 %v426
    %615 = vmatpush1.msra.mxu0 %v425
    %616 = vmatprep.subr.mxu0 %v423
    %617 = vmatpush1.msra.mxu0 %v422
    %618 = vmatprep.subr.mxu0 %v420
    %619 = vmatpush1.msra.mxu0 %v419
    %620 = vmatprep.subr.mxu0 %v417
    %621 = vmatpush1.msra.mxu0 %v416
    %622 = vmatprep.subr.mxu0 %v414
    %623 = vmatpush1.msra.mxu0 %v413
    %624 = vmatprep.subr.mxu0 %v411
    %625 = vmatpush1.msra.mxu0 %v410
    %626 = vmatprep.subr.mxu0 %v408
    %627 = vmatpush1.msra.mxu0 %v407
    %628 = vmatprep.subr.mxu0 %v405
    %629 = vmatpush1.msra.mxu0 %v404
    %630 = vmatprep.subr.mxu0 %v402
    %631 = vmatpush1.msra.mxu0 %v401
    %632 = vmatprep.subr.mxu0 %v399
    %633 = vmatpush1.msra.mxu0 %v398
    %634 = vmatprep.subr.mxu0 %v396
    %635 = vmatpush1.msra.mxu0 %v395
    %636 = vmatprep.subr.mxu0 %v393
    %637 = vmatpush1.msra.mxu0 %v392
    %638 = vmatprep.subr.mxu0 %v390
    %639 = vmatpush1.msra.mxu0 %v389
    %640 = vmatprep.subr.mxu0 0.0
    %641 = vmatpush2.msra.mxu0 0.0
    %642 = vmatprep.subr.mxu0 0.0
    %643 = vmatpush2.msra.mxu0 0.0
    %644 = vmatprep.subr.mxu0 0.0
    %645 = vmatpush2.msra.mxu0 0.0
    %646 = vmatprep.subr.mxu0 0.0
    %647 = vmatpush2.msra.mxu0 0.0
    %648 = vmatprep.subr.mxu0 0.0
    %649 = vmatpush2.msra.mxu0 0.0
    %650 = vmatprep.subr.mxu0 0.0
    %651 = vmatpush2.msra.mxu0 0.0
    %652 = vmatprep.subr.mxu0 0.0
    %653 = vmatpush2.msra.mxu0 0.0
    %654 = vmatprep.subr.mxu0 0.0
    %655 = vmatpush2.msra.mxu0 0.0
    %656 = vmatprep.subr.mxu0 0.0
    %657 = vmatpush2.msra.mxu0 0.0
    %658 = vmatprep.subr.mxu0 0.0
    %659 = vmatpush2.msra.mxu0 0.0
    %660 = vmatprep.subr.mxu0 0.0
    %661 = vmatpush2.msra.mxu0 0.0
    %662 = vmatprep.subr.mxu0 0.0
    %663 = vmatpush2.msra.mxu0 0.0
    %664 = vmatprep.subr.mxu0 0.0
    %665 = vmatpush2.msra.mxu0 0.0
    %666 = vmatprep.subr.mxu0 0.0
    %667 = vmatpush2.msra.mxu0 0.0
    %668 = vmatprep.subr.mxu0 0.0
    %669 = vmatpush2.msra.mxu0 0.0
    %670 = vmatprep.subr.mxu0 0.0
    %671 = vmatpush2.msra.mxu0 0.0
    %672 = vmatprep.mubr.f32.mxu0 0.0
    %673 = vmatmul.mubr.f32.gmra.mxu0 %v602
    %v674 = vpop.f32.mrf.mxu0
    %v675 = vadd.f32 0.0, %v674
    %v676 = vpop.f32.mrf.mxu0
    %v677 = vadd.f32 0.0, %v676
    %678 = vdwg.mxu0
    %679 = vmatprep.subr.mxu0 0.0
    %680 = vmatpush1.msra.mxu0 %v436
    %681 = vmatprep.subr.mxu0 0.0
    %682 = vmatpush1.msra.mxu0 %v433
    %683 = vmatprep.subr.mxu0 0.0
    %684 = vmatpush1.msra.mxu0 %v430
    %685 = vmatprep.subr.mxu0 0.0
    %686 = vmatpush1.msra.mxu0 %v427
    %687 = vmatprep.subr.mxu0 0.0
    %688 = vmatpush1.msra.mxu0 %v424
    %689 = vmatprep.subr.mxu0 0.0
    %690 = vmatpush1.msra.mxu0 %v421
    %691 = vmatprep.subr.mxu0 0.0
    %692 = vmatpush1.msra.mxu0 %v418
    %693 = vmatprep.subr.mxu0 0.0
    %694 = vmatpush1.msra.mxu0 %v415
    %695 = vmatprep.subr.mxu0 0.0
    %696 = vmatpush1.msra.mxu0 %v412
    %697 = vmatprep.subr.mxu0 0.0
    %698 = vmatpush1.msra.mxu0 %v409
    %699 = vmatprep.subr.mxu0 0.0
    %700 = vmatpush1.msra.mxu0 %v406
    %701 = vmatprep.subr.mxu0 0.0
    %702 = vmatpush1.msra.mxu0 %v403
    %703 = vmatprep.subr.mxu0 0.0
    %704 = vmatpush1.msra.mxu0 %v400
    %705 = vmatprep.subr.mxu0 0.0
    %706 = vmatpush1.msra.mxu0 %v397
    %707 = vmatprep.subr.mxu0 0.0
    %708 = vmatpush1.msra.mxu0 %v394
    %709 = vmatprep.subr.mxu0 0.0
    %710 = vmatpush1.msra.mxu0 %v391
    %711 = vmatprep.subr.mxu0 0.0
    %712 = vmatpush2.msra.mxu0 0.0
    %713 = vmatprep.subr.mxu0 0.0
    %714 = vmatpush2.msra.mxu0 0.0
    %715 = vmatprep.subr.mxu0 0.0
    %716 = vmatpush2.msra.mxu0 0.0
    %717 = vmatprep.subr.mxu0 0.0
    %718 = vmatpush2.msra.mxu0 0.0
    %719 = vmatprep.subr.mxu0 0.0
    %720 = vmatpush2.msra.mxu0 0.0
    %721 = vmatprep.subr.mxu0 0.0
    %722 = vmatpush2.msra.mxu0 0.0
    %723 = vmatprep.subr.mxu0 0.0
    %724 = vmatpush2.msra.mxu0 0.0
    %725 = vmatprep.subr.mxu0 0.0
    %726 = vmatpush2.msra.mxu0 0.0
    %727 = vmatprep.subr.mxu0 0.0
    %728 = vmatpush2.msra.mxu0 0.0
    %729 = vmatprep.subr.mxu0 0.0
    %730 = vmatpush2.msra.mxu0 0.0
    %731 = vmatprep.subr.mxu0 0.0
    %732 = vmatpush2.msra.mxu0 0.0
    %733 = vmatprep.subr.mxu0 0.0
    %734 = vmatpush2.msra.mxu0 0.0
    %735 = vmatprep.subr.mxu0 0.0
    %736 = vmatpush2.msra.mxu0 0.0
    %737 = vmatprep.subr.mxu0 0.0
    %738 = vmatpush2.msra.mxu0 0.0
    %739 = vmatprep.subr.mxu0 0.0
    %740 = vmatpush2.msra.mxu0 0.0
    %741 = vmatprep.subr.mxu0 0.0
    %742 = vmatpush2.msra.mxu0 0.0
    %743 = vmatprep.mubr.f32.mxu0 0.0
    %744 = vmatmul.mubr.f32.gmra.mxu0 %v602
    %v745 = vpop.f32.mrf.mxu0
    %v746 = vadd.f32 0.0, %v745
    %v747 = vpop.f32.mrf.mxu0
    %748 = vdwg.mxu0
    %v749 = vadd.f32 %v605, %v675
    %v750 = vxor.u32 %v749, 2147483648
    %v751 = vmul.f32 %v750, 1.442695
    %v752 = vpow.pop %v751
    %v753 = vadd.f32 %v752, 1.0
    %v754 = vrcp.pop %v753
    %v755 = vmul.f32 1.0, %v754
    %v756 = vadd.f32 %v606, %v677
    %v757 = vxor.u32 %v756, 2147483648
    %v758 = vmul.f32 %v757, 1.442695
    %v759 = vpow.pop %v758
    %v760 = vadd.f32 %v759, 1.0
    %v761 = vrcp.pop %v760
    %v762 = vmul.f32 1.0, %v761
    %v763 = vadd.f32 %v746, %v387
    %v764 = vmul.f32 %v755, %v763
    %v765 = vadd.f32 %v607, %v764
    %v766 = vtanh.pop %v765
    %v767 = vsub.f32 %v602, %v766
    %v768 = vmul.f32 %v762, %v767
    %v769 = vadd.f32 %v766, %v768
    %s770 = scalar_lea.vmem [#allocation10], 8
    %771 = vst [vmem:[%s770] sm:$0xff] %v769
    %s772 = scalar_lea.vmem [#allocation3], 48
    %v773 = vld [vmem:[%s772] sm:$0xff]
    %v774 = vld [vmem:[%s772 + $0x8] sm:$0xff]
    %v775 = vld [vmem:[%s772 + $0x10] sm:$0xff]
    %776 = vmatprep.subr.mxu0 %v435
    %777 = vmatpush1.msra.mxu0 %v434
    %778 = vmatprep.subr.mxu0 %v432
    %779 = vmatpush1.msra.mxu0 %v431
    %780 = vmatprep.subr.mxu0 %v429
    %781 = vmatpush1.msra.mxu0 %v428
    %782 = vmatprep.subr.mxu0 %v426
    %783 = vmatpush1.msra.mxu0 %v425
    %784 = vmatprep.subr.mxu0 %v423
    %785 = vmatpush1.msra.mxu0 %v422
    %786 = vmatprep.subr.mxu0 %v420
    %787 = vmatpush1.msra.mxu0 %v419
    %788 = vmatprep.subr.mxu0 %v417
    %789 = vmatpush1.msra.mxu0 %v416
    %790 = vmatprep.subr.mxu0 %v414
    %791 = vmatpush1.msra.mxu0 %v413
    %792 = vmatprep.subr.mxu0 %v411
    %793 = vmatpush1.msra.mxu0 %v410
    %794 = vmatprep.subr.mxu0 %v408
    %795 = vmatpush1.msra.mxu0 %v407
    %796 = vmatprep.subr.mxu0 %v405
    %797 = vmatpush1.msra.mxu0 %v404
    %798 = vmatprep.subr.mxu0 %v402
    %799 = vmatpush1.msra.mxu0 %v401
    %800 = vmatprep.subr.mxu0 %v399
    %801 = vmatpush1.msra.mxu0 %v398
    %802 = vmatprep.subr.mxu0 %v396
    %803 = vmatpush1.msra.mxu0 %v395
    %804 = vmatprep.subr.mxu0 %v393
    %805 = vmatpush1.msra.mxu0 %v392
    %806 = vmatprep.subr.mxu0 %v390
    %807 = vmatpush1.msra.mxu0 %v389
    %808 = vmatprep.subr.mxu0 0.0
    %809 = vmatpush2.msra.mxu0 0.0
    %810 = vmatprep.subr.mxu0 0.0
    %811 = vmatpush2.msra.mxu0 0.0
    %812 = vmatprep.subr.mxu0 0.0
    %813 = vmatpush2.msra.mxu0 0.0
    %814 = vmatprep.subr.mxu0 0.0
    %815 = vmatpush2.msra.mxu0 0.0
    %816 = vmatprep.subr.mxu0 0.0
    %817 = vmatpush2.msra.mxu0 0.0
    %818 = vmatprep.subr.mxu0 0.0
    %819 = vmatpush2.msra.mxu0 0.0
    %820 = vmatprep.subr.mxu0 0.0
    %821 = vmatpush2.msra.mxu0 0.0
    %822 = vmatprep.subr.mxu0 0.0
    %823 = vmatpush2.msra.mxu0 0.0
    %824 = vmatprep.subr.mxu0 0.0
    %825 = vmatpush2.msra.mxu0 0.0
    %826 = vmatprep.subr.mxu0 0.0
    %827 = vmatpush2.msra.mxu0 0.0
    %828 = vmatprep.subr.mxu0 0.0
    %829 = vmatpush2.msra.mxu0 0.0
    %830 = vmatprep.subr.mxu0 0.0
    %831 = vmatpush2.msra.mxu0 0.0
    %832 = vmatprep.subr.mxu0 0.0
    %833 = vmatpush2.msra.mxu0 0.0
    %834 = vmatprep.subr.mxu0 0.0
    %835 = vmatpush2.msra.mxu0 0.0
    %836 = vmatprep.subr.mxu0 0.0
    %837 = vmatpush2.msra.mxu0 0.0
    %838 = vmatprep.subr.mxu0 0.0
    %839 = vmatpush2.msra.mxu0 0.0
    %840 = vmatprep.mubr.f32.mxu0 0.0
    %841 = vmatmul.mubr.f32.gmra.mxu0 %v769
    %v842 = vpop.f32.mrf.mxu0
    %v843 = vadd.f32 0.0, %v842
    %v844 = vpop.f32.mrf.mxu0
    %v845 = vadd.f32 0.0, %v844
    %846 = vdwg.mxu0
    %847 = vmatprep.subr.mxu0 0.0
    %848 = vmatpush1.msra.mxu0 %v436
    %849 = vmatprep.subr.mxu0 0.0
    %850 = vmatpush1.msra.mxu0 %v433
    %851 = vmatprep.subr.mxu0 0.0
    %852 = vmatpush1.msra.mxu0 %v430
    %853 = vmatprep.subr.mxu0 0.0
    %854 = vmatpush1.msra.mxu0 %v427
    %855 = vmatprep.subr.mxu0 0.0
    %856 = vmatpush1.msra.mxu0 %v424
    %857 = vmatprep.subr.mxu0 0.0
    %858 = vmatpush1.msra.mxu0 %v421
    %859 = vmatprep.subr.mxu0 0.0
    %860 = vmatpush1.msra.mxu0 %v418
    %861 = vmatprep.subr.mxu0 0.0
    %862 = vmatpush1.msra.mxu0 %v415
    %863 = vmatprep.subr.mxu0 0.0
    %864 = vmatpush1.msra.mxu0 %v412
    %865 = vmatprep.subr.mxu0 0.0
    %866 = vmatpush1.msra.mxu0 %v409
    %867 = vmatprep.subr.mxu0 0.0
    %868 = vmatpush1.msra.mxu0 %v406
    %869 = vmatprep.subr.mxu0 0.0
    %870 = vmatpush1.msra.mxu0 %v403
    %871 = vmatprep.subr.mxu0 0.0
    %872 = vmatpush1.msra.mxu0 %v400
    %873 = vmatprep.subr.mxu0 0.0
    %874 = vmatpush1.msra.mxu0 %v397
    %875 = vmatprep.subr.mxu0 0.0
    %876 = vmatpush1.msra.mxu0 %v394
    %877 = vmatprep.subr.mxu0 0.0
    %878 = vmatpush1.msra.mxu0 %v391
    %879 = vmatprep.subr.mxu0 0.0
    %880 = vmatpush2.msra.mxu0 0.0
    %881 = vmatprep.subr.mxu0 0.0
    %882 = vmatpush2.msra.mxu0 0.0
    %883 = vmatprep.subr.mxu0 0.0
    %884 = vmatpush2.msra.mxu0 0.0
    %885 = vmatprep.subr.mxu0 0.0
    %886 = vmatpush2.msra.mxu0 0.0
    %887 = vmatprep.subr.mxu0 0.0
    %888 = vmatpush2.msra.mxu0 0.0
    %889 = vmatprep.subr.mxu0 0.0
    %890 = vmatpush2.msra.mxu0 0.0
    %891 = vmatprep.subr.mxu0 0.0
    %892 = vmatpush2.msra.mxu0 0.0
    %893 = vmatprep.subr.mxu0 0.0
    %894 = vmatpush2.msra.mxu0 0.0
    %895 = vmatprep.subr.mxu0 0.0
    %896 = vmatpush2.msra.mxu0 0.0
    %897 = vmatprep.subr.mxu0 0.0
    %898 = vmatpush2.msra.mxu0 0.0
    %899 = vmatprep.subr.mxu0 0.0
    %900 = vmatpush2.msra.mxu0 0.0
    %901 = vmatprep.subr.mxu0 0.0
    %902 = vmatpush2.msra.mxu0 0.0
    %903 = vmatprep.subr.mxu0 0.0
    %904 = vmatpush2.msra.mxu0 0.0
    %905 = vmatprep.subr.mxu0 0.0
    %906 = vmatpush2.msra.mxu0 0.0
    %907 = vmatprep.subr.mxu0 0.0
    %908 = vmatpush2.msra.mxu0 0.0
    %909 = vmatprep.subr.mxu0 0.0
    %910 = vmatpush2.msra.mxu0 0.0
    %911 = vmatprep.mubr.f32.mxu0 0.0
    %912 = vmatmul.mubr.f32.gmra.mxu0 %v769
    %v913 = vpop.f32.mrf.mxu0
    %v914 = vadd.f32 0.0, %v913
    %v915 = vpop.f32.mrf.mxu0
    %916 = vdwg.mxu0
    %v917 = vadd.f32 %v773, %v843
    %v918 = vxor.u32 %v917, 2147483648
    %v919 = vmul.f32 %v918, 1.442695
    %v920 = vpow.pop %v919
    %v921 = vadd.f32 %v920, 1.0
    %v922 = vrcp.pop %v921
    %v923 = vmul.f32 1.0, %v922
    %v924 = vadd.f32 %v774, %v845
    %v925 = vxor.u32 %v924, 2147483648
    %v926 = vmul.f32 %v925, 1.442695
    %v927 = vpow.pop %v926
    %v928 = vadd.f32 %v927, 1.0
    %v929 = vrcp.pop %v928
    %v930 = vmul.f32 1.0, %v929
    %v931 = vadd.f32 %v914, %v387
    %v932 = vmul.f32 %v923, %v931
    %v933 = vadd.f32 %v775, %v932
    %v934 = vtanh.pop %v933
    %v935 = vsub.f32 %v769, %v934
    %v936 = vmul.f32 %v930, %v935
    %v937 = vadd.f32 %v934, %v936
    %s938 = scalar_lea.vmem [#allocation10], 16
    %939 = vst [vmem:[%s938] sm:$0xff] %v937
    %s940 = scalar_lea.vmem [#allocation3], 72
    %v941 = vld [vmem:[%s940] sm:$0xff]
    %v942 = vld [vmem:[%s940 + $0x8] sm:$0xff]
    %v943 = vld [vmem:[%s940 + $0x10] sm:$0xff]
    %944 = vmatprep.subr.mxu0 %v435
    %945 = vmatpush1.msra.mxu0 %v434
    %946 = vmatprep.subr.mxu0 %v432
    %947 = vmatpush1.msra.mxu0 %v431
    %948 = vmatprep.subr.mxu0 %v429
    %949 = vmatpush1.msra.mxu0 %v428
    %950 = vmatprep.subr.mxu0 %v426
    %951 = vmatpush1.msra.mxu0 %v425
    %952 = vmatprep.subr.mxu0 %v423
    %953 = vmatpush1.msra.mxu0 %v422
    %954 = vmatprep.subr.mxu0 %v420
    %955 = vmatpush1.msra.mxu0 %v419
    %956 = vmatprep.subr.mxu0 %v417
    %957 = vmatpush1.msra.mxu0 %v416
    %958 = vmatprep.subr.mxu0 %v414
    %959 = vmatpush1.msra.mxu0 %v413
    %960 = vmatprep.subr.mxu0 %v411
    %961 = vmatpush1.msra.mxu0 %v410
    %962 = vmatprep.subr.mxu0 %v408
    %963 = vmatpush1.msra.mxu0 %v407
    %964 = vmatprep.subr.mxu0 %v405
    %965 = vmatpush1.msra.mxu0 %v404
    %966 = vmatprep.subr.mxu0 %v402
    %967 = vmatpush1.msra.mxu0 %v401
    %968 = vmatprep.subr.mxu0 %v399
    %969 = vmatpush1.msra.mxu0 %v398
    %970 = vmatprep.subr.mxu0 %v396
    %971 = vmatpush1.msra.mxu0 %v395
    %972 = vmatprep.subr.mxu0 %v393
    %973 = vmatpush1.msra.mxu0 %v392
    %974 = vmatprep.subr.mxu0 %v390
    %975 = vmatpush1.msra.mxu0 %v389
    %976 = vmatprep.subr.mxu0 0.0
    %977 = vmatpush2.msra.mxu0 0.0
    %978 = vmatprep.subr.mxu0 0.0
    %979 = vmatpush2.msra.mxu0 0.0
    %980 = vmatprep.subr.mxu0 0.0
    %981 = vmatpush2.msra.mxu0 0.0
    %982 = vmatprep.subr.mxu0 0.0
    %983 = vmatpush2.msra.mxu0 0.0
    %984 = vmatprep.subr.mxu0 0.0
    %985 = vmatpush2.msra.mxu0 0.0
    %986 = vmatprep.subr.mxu0 0.0
    %987 = vmatpush2.msra.mxu0 0.0
    %988 = vmatprep.subr.mxu0 0.0
    %989 = vmatpush2.msra.mxu0 0.0
    %990 = vmatprep.subr.mxu0 0.0
    %991 = vmatpush2.msra.mxu0 0.0
    %992 = vmatprep.subr.mxu0 0.0
    %993 = vmatpush2.msra.mxu0 0.0
    %994 = vmatprep.subr.mxu0 0.0
    %995 = vmatpush2.msra.mxu0 0.0
    %996 = vmatprep.subr.mxu0 0.0
    %997 = vmatpush2.msra.mxu0 0.0
    %998 = vmatprep.subr.mxu0 0.0
    %999 = vmatpush2.msra.mxu0 0.0
    %1000 = vmatprep.subr.mxu0 0.0
    %1001 = vmatpush2.msra.mxu0 0.0
    %1002 = vmatprep.subr.mxu0 0.0
    %1003 = vmatpush2.msra.mxu0 0.0
    %1004 = vmatprep.subr.mxu0 0.0
    %1005 = vmatpush2.msra.mxu0 0.0
    %1006 = vmatprep.subr.mxu0 0.0
    %1007 = vmatpush2.msra.mxu0 0.0
    %1008 = vmatprep.mubr.f32.mxu0 0.0
    %1009 = vmatmul.mubr.f32.gmra.mxu0 %v937
    %v1010 = vpop.f32.mrf.mxu0
    %v1011 = vadd.f32 0.0, %v1010
    %v1012 = vpop.f32.mrf.mxu0
    %v1013 = vadd.f32 0.0, %v1012
    %1014 = vdwg.mxu0
    %1015 = vmatprep.subr.mxu0 0.0
    %1016 = vmatpush1.msra.mxu0 %v436
    %1017 = vmatprep.subr.mxu0 0.0
    %1018 = vmatpush1.msra.mxu0 %v433
    %1019 = vmatprep.subr.mxu0 0.0
    %1020 = vmatpush1.msra.mxu0 %v430
    %1021 = vmatprep.subr.mxu0 0.0
    %1022 = vmatpush1.msra.mxu0 %v427
    %1023 = vmatprep.subr.mxu0 0.0
    %1024 = vmatpush1.msra.mxu0 %v424
    %1025 = vmatprep.subr.mxu0 0.0
    %1026 = vmatpush1.msra.mxu0 %v421
    %1027 = vmatprep.subr.mxu0 0.0
    %1028 = vmatpush1.msra.mxu0 %v418
    %1029 = vmatprep.subr.mxu0 0.0
    %1030 = vmatpush1.msra.mxu0 %v415
    %1031 = vmatprep.subr.mxu0 0.0
    %1032 = vmatpush1.msra.mxu0 %v412
    %1033 = vmatprep.subr.mxu0 0.0
    %1034 = vmatpush1.msra.mxu0 %v409
    %1035 = vmatprep.subr.mxu0 0.0
    %1036 = vmatpush1.msra.mxu0 %v406
    %1037 = vmatprep.subr.mxu0 0.0
    %1038 = vmatpush1.msra.mxu0 %v403
    %1039 = vmatprep.subr.mxu0 0.0
    %1040 = vmatpush1.msra.mxu0 %v400
    %1041 = vmatprep.subr.mxu0 0.0
    %1042 = vmatpush1.msra.mxu0 %v397
    %1043 = vmatprep.subr.mxu0 0.0
    %1044 = vmatpush1.msra.mxu0 %v394
    %1045 = vmatprep.subr.mxu0 0.0
    %1046 = vmatpush1.msra.mxu0 %v391
    %1047 = vmatprep.subr.mxu0 0.0
    %1048 = vmatpush2.msra.mxu0 0.0
    %1049 = vmatprep.subr.mxu0 0.0
    %1050 = vmatpush2.msra.mxu0 0.0
    %1051 = vmatprep.subr.mxu0 0.0
    %1052 = vmatpush2.msra.mxu0 0.0
    %1053 = vmatprep.subr.mxu0 0.0
    %1054 = vmatpush2.msra.mxu0 0.0
    %1055 = vmatprep.subr.mxu0 0.0
    %1056 = vmatpush2.msra.mxu0 0.0
    %1057 = vmatprep.subr.mxu0 0.0
    %1058 = vmatpush2.msra.mxu0 0.0
    %1059 = vmatprep.subr.mxu0 0.0
    %1060 = vmatpush2.msra.mxu0 0.0
    %1061 = vmatprep.subr.mxu0 0.0
    %1062 = vmatpush2.msra.mxu0 0.0
    %1063 = vmatprep.subr.mxu0 0.0
    %1064 = vmatpush2.msra.mxu0 0.0
    %1065 = vmatprep.subr.mxu0 0.0
    %1066 = vmatpush2.msra.mxu0 0.0
    %1067 = vmatprep.subr.mxu0 0.0
    %1068 = vmatpush2.msra.mxu0 0.0
    %1069 = vmatprep.subr.mxu0 0.0
    %1070 = vmatpush2.msra.mxu0 0.0
    %1071 = vmatprep.subr.mxu0 0.0
    %1072 = vmatpush2.msra.mxu0 0.0
    %1073 = vmatprep.subr.mxu0 0.0
    %1074 = vmatpush2.msra.mxu0 0.0
    %1075 = vmatprep.subr.mxu0 0.0
    %1076 = vmatpush2.msra.mxu0 0.0
    %1077 = vmatprep.subr.mxu0 0.0
    %1078 = vmatpush2.msra.mxu0 0.0
    %1079 = vmatprep.mubr.f32.mxu0 0.0
    %1080 = vmatmul.mubr.f32.gmra.mxu0 %v937
    %v1081 = vpop.f32.mrf.mxu0
    %v1082 = vadd.f32 0.0, %v1081
    %v1083 = vpop.f32.mrf.mxu0
    %1084 = vdwg.mxu0
    %v1085 = vadd.f32 %v941, %v1011
    %v1086 = vxor.u32 %v1085, 2147483648
    %v1087 = vmul.f32 %v1086, 1.442695
    %v1088 = vpow.pop %v1087
    %v1089 = vadd.f32 %v1088, 1.0
    %v1090 = vrcp.pop %v1089
    %v1091 = vmul.f32 1.0, %v1090
    %v1092 = vadd.f32 %v942, %v1013
    %v1093 = vxor.u32 %v1092, 2147483648
    %v1094 = vmul.f32 %v1093, 1.442695
    %v1095 = vpow.pop %v1094
    %v1096 = vadd.f32 %v1095, 1.0
    %v1097 = vrcp.pop %v1096
    %v1098 = vmul.f32 1.0, %v1097
    %v1099 = vadd.f32 %v1082, %v387
    %v1100 = vmul.f32 %v1091, %v1099
    %v1101 = vadd.f32 %v943, %v1100
    %v1102 = vtanh.pop %v1101
    %v1103 = vsub.f32 %v937, %v1102
    %v1104 = vmul.f32 %v1098, %v1103
    %v1105 = vadd.f32 %v1102, %v1104
    %s1106 = scalar_lea.vmem [#allocation10], 24
    %1107 = vst [vmem:[%s1106] sm:$0xff] %v1105
    %s1108 = scalar_lea.vmem [#allocation3], 96
    %v1109 = vld [vmem:[%s1108] sm:$0xff]
    %v1110 = vld [vmem:[%s1108 + $0x8] sm:$0xff]
    %v1111 = vld [vmem:[%s1108 + $0x10] sm:$0xff]
    %1112 = vmatprep.subr.mxu0 %v435
    %1113 = vmatpush1.msra.mxu0 %v434
    %1114 = vmatprep.subr.mxu0 %v432
    %1115 = vmatpush1.msra.mxu0 %v431
    %1116 = vmatprep.subr.mxu0 %v429
    %1117 = vmatpush1.msra.mxu0 %v428
    %1118 = vmatprep.subr.mxu0 %v426
    %1119 = vmatpush1.msra.mxu0 %v425
    %1120 = vmatprep.subr.mxu0 %v423
    %1121 = vmatpush1.msra.mxu0 %v422
    %1122 = vmatprep.subr.mxu0 %v420
    %1123 = vmatpush1.msra.mxu0 %v419
    %1124 = vmatprep.subr.mxu0 %v417
    %1125 = vmatpush1.msra.mxu0 %v416
    %1126 = vmatprep.subr.mxu0 %v414
    %1127 = vmatpush1.msra.mxu0 %v413
    %1128 = vmatprep.subr.mxu0 %v411
    %1129 = vmatpush1.msra.mxu0 %v410
    %1130 = vmatprep.subr.mxu0 %v408
    %1131 = vmatpush1.msra.mxu0 %v407
    %1132 = vmatprep.subr.mxu0 %v405
    %1133 = vmatpush1.msra.mxu0 %v404
    %1134 = vmatprep.subr.mxu0 %v402
    %1135 = vmatpush1.msra.mxu0 %v401
    %1136 = vmatprep.subr.mxu0 %v399
    %1137 = vmatpush1.msra.mxu0 %v398
    %1138 = vmatprep.subr.mxu0 %v396
    %1139 = vmatpush1.msra.mxu0 %v395
    %1140 = vmatprep.subr.mxu0 %v393
    %1141 = vmatpush1.msra.mxu0 %v392
    %1142 = vmatprep.subr.mxu0 %v390
    %1143 = vmatpush1.msra.mxu0 %v389
    %1144 = vmatprep.subr.mxu0 0.0
    %1145 = vmatpush2.msra.mxu0 0.0
    %1146 = vmatprep.subr.mxu0 0.0
    %1147 = vmatpush2.msra.mxu0 0.0
    %1148 = vmatprep.subr.mxu0 0.0
    %1149 = vmatpush2.msra.mxu0 0.0
    %1150 = vmatprep.subr.mxu0 0.0
    %1151 = vmatpush2.msra.mxu0 0.0
    %1152 = vmatprep.subr.mxu0 0.0
    %1153 = vmatpush2.msra.mxu0 0.0
    %1154 = vmatprep.subr.mxu0 0.0
    %1155 = vmatpush2.msra.mxu0 0.0
    %1156 = vmatprep.subr.mxu0 0.0
    %1157 = vmatpush2.msra.mxu0 0.0
    %1158 = vmatprep.subr.mxu0 0.0
    %1159 = vmatpush2.msra.mxu0 0.0
    %1160 = vmatprep.subr.mxu0 0.0
    %1161 = vmatpush2.msra.mxu0 0.0
    %1162 = vmatprep.subr.mxu0 0.0
    %1163 = vmatpush2.msra.mxu0 0.0
    %1164 = vmatprep.subr.mxu0 0.0
    %1165 = vmatpush2.msra.mxu0 0.0
    %1166 = vmatprep.subr.mxu0 0.0
    %1167 = vmatpush2.msra.mxu0 0.0
    %1168 = vmatprep.subr.mxu0 0.0
    %1169 = vmatpush2.msra.mxu0 0.0
    %1170 = vmatprep.subr.mxu0 0.0
    %1171 = vmatpush2.msra.mxu0 0.0
    %1172 = vmatprep.subr.mxu0 0.0
    %1173 = vmatpush2.msra.mxu0 0.0
    %1174 = vmatprep.subr.mxu0 0.0
    %1175 = vmatpush2.msra.mxu0 0.0
    %1176 = vmatprep.mubr.f32.mxu0 0.0
    %1177 = vmatmul.mubr.f32.gmra.mxu0 %v1105
    %v1178 = vpop.f32.mrf.mxu0
    %v1179 = vadd.f32 0.0, %v1178
    %v1180 = vpop.f32.mrf.mxu0
    %v1181 = vadd.f32 0.0, %v1180
    %1182 = vdwg.mxu0
    %1183 = vmatprep.subr.mxu0 0.0
    %1184 = vmatpush1.msra.mxu0 %v436
    %1185 = vmatprep.subr.mxu0 0.0
    %1186 = vmatpush1.msra.mxu0 %v433
    %1187 = vmatprep.subr.mxu0 0.0
    %1188 = vmatpush1.msra.mxu0 %v430
    %1189 = vmatprep.subr.mxu0 0.0
    %1190 = vmatpush1.msra.mxu0 %v427
    %1191 = vmatprep.subr.mxu0 0.0
    %1192 = vmatpush1.msra.mxu0 %v424
    %1193 = vmatprep.subr.mxu0 0.0
    %1194 = vmatpush1.msra.mxu0 %v421
    %1195 = vmatprep.subr.mxu0 0.0
    %1196 = vmatpush1.msra.mxu0 %v418
    %1197 = vmatprep.subr.mxu0 0.0
    %1198 = vmatpush1.msra.mxu0 %v415
    %1199 = vmatprep.subr.mxu0 0.0
    %1200 = vmatpush1.msra.mxu0 %v412
    %1201 = vmatprep.subr.mxu0 0.0
    %1202 = vmatpush1.msra.mxu0 %v409
    %1203 = vmatprep.subr.mxu0 0.0
    %1204 = vmatpush1.msra.mxu0 %v406
    %1205 = vmatprep.subr.mxu0 0.0
    %1206 = vmatpush1.msra.mxu0 %v403
    %1207 = vmatprep.subr.mxu0 0.0
    %1208 = vmatpush1.msra.mxu0 %v400
    %1209 = vmatprep.subr.mxu0 0.0
    %1210 = vmatpush1.msra.mxu0 %v397
    %1211 = vmatprep.subr.mxu0 0.0
    %1212 = vmatpush1.msra.mxu0 %v394
    %1213 = vmatprep.subr.mxu0 0.0
    %1214 = vmatpush1.msra.mxu0 %v391
    %1215 = vmatprep.subr.mxu0 0.0
    %1216 = vmatpush2.msra.mxu0 0.0
    %1217 = vmatprep.subr.mxu0 0.0
    %1218 = vmatpush2.msra.mxu0 0.0
    %1219 = vmatprep.subr.mxu0 0.0
    %1220 = vmatpush2.msra.mxu0 0.0
    %1221 = vmatprep.subr.mxu0 0.0
    %1222 = vmatpush2.msra.mxu0 0.0
    %1223 = vmatprep.subr.mxu0 0.0
    %1224 = vmatpush2.msra.mxu0 0.0
    %1225 = vmatprep.subr.mxu0 0.0
    %1226 = vmatpush2.msra.mxu0 0.0
    %1227 = vmatprep.subr.mxu0 0.0
    %1228 = vmatpush2.msra.mxu0 0.0
    %1229 = vmatprep.subr.mxu0 0.0
    %1230 = vmatpush2.msra.mxu0 0.0
    %1231 = vmatprep.subr.mxu0 0.0
    %1232 = vmatpush2.msra.mxu0 0.0
    %1233 = vmatprep.subr.mxu0 0.0
    %1234 = vmatpush2.msra.mxu0 0.0
    %1235 = vmatprep.subr.mxu0 0.0
    %1236 = vmatpush2.msra.mxu0 0.0
    %1237 = vmatprep.subr.mxu0 0.0
    %1238 = vmatpush2.msra.mxu0 0.0
    %1239 = vmatprep.subr.mxu0 0.0
    %1240 = vmatpush2.msra.mxu0 0.0
    %1241 = vmatprep.subr.mxu0 0.0
    %1242 = vmatpush2.msra.mxu0 0.0
    %1243 = vmatprep.subr.mxu0 0.0
    %1244 = vmatpush2.msra.mxu0 0.0
    %1245 = vmatprep.subr.mxu0 0.0
    %1246 = vmatpush2.msra.mxu0 0.0
    %1247 = vmatprep.mubr.f32.mxu0 0.0
    %1248 = vmatmul.mubr.f32.gmra.mxu0 %v1105
    %v1249 = vpop.f32.mrf.mxu0
    %v1250 = vadd.f32 0.0, %v1249
    %v1251 = vpop.f32.mrf.mxu0
    %1252 = vdwg.mxu0
    %v1253 = vadd.f32 %v1109, %v1179
    %v1254 = vxor.u32 %v1253, 2147483648
    %v1255 = vmul.f32 %v1254, 1.442695
    %v1256 = vpow.pop %v1255
    %v1257 = vadd.f32 %v1256, 1.0
    %v1258 = vrcp.pop %v1257
    %v1259 = vmul.f32 1.0, %v1258
    %v1260 = vadd.f32 %v1110, %v1181
    %v1261 = vxor.u32 %v1260, 2147483648
    %v1262 = vmul.f32 %v1261, 1.442695
    %v1263 = vpow.pop %v1262
    %v1264 = vadd.f32 %v1263, 1.0
    %v1265 = vrcp.pop %v1264
    %v1266 = vmul.f32 1.0, %v1265
    %v1267 = vadd.f32 %v1250, %v387
    %v1268 = vmul.f32 %v1259, %v1267
    %v1269 = vadd.f32 %v1111, %v1268
    %v1270 = vtanh.pop %v1269
    %v1271 = vsub.f32 %v1105, %v1270
    %v1272 = vmul.f32 %v1266, %v1271
    %v1273 = vadd.f32 %v1270, %v1272
    %s1274 = scalar_lea.vmem [#allocation10], 32
    %1275 = vst [vmem:[%s1274] sm:$0xff] %v1273
    %s1276 = scalar_lea.vmem [#allocation3], 120
    %v1277 = vld [vmem:[%s1276] sm:$0xff]
    %v1278 = vld [vmem:[%s1276 + $0x8] sm:$0xff]
    %v1279 = vld [vmem:[%s1276 + $0x10] sm:$0xff]
    %1280 = vmatprep.subr.mxu0 %v435
    %1281 = vmatpush1.msra.mxu0 %v434
    %1282 = vmatprep.subr.mxu0 %v432
    %1283 = vmatpush1.msra.mxu0 %v431
    %1284 = vmatprep.subr.mxu0 %v429
    %1285 = vmatpush1.msra.mxu0 %v428
    %1286 = vmatprep.subr.mxu0 %v426
    %1287 = vmatpush1.msra.mxu0 %v425
    %1288 = vmatprep.subr.mxu0 %v423
    %1289 = vmatpush1.msra.mxu0 %v422
    %1290 = vmatprep.subr.mxu0 %v420
    %1291 = vmatpush1.msra.mxu0 %v419
    %1292 = vmatprep.subr.mxu0 %v417
    %1293 = vmatpush1.msra.mxu0 %v416
    %1294 = vmatprep.subr.mxu0 %v414
    %1295 = vmatpush1.msra.mxu0 %v413
    %1296 = vmatprep.subr.mxu0 %v411
    %1297 = vmatpush1.msra.mxu0 %v410
    %1298 = vmatprep.subr.mxu0 %v408
    %1299 = vmatpush1.msra.mxu0 %v407
    %1300 = vmatprep.subr.mxu0 %v405
    %1301 = vmatpush1.msra.mxu0 %v404
    %1302 = vmatprep.subr.mxu0 %v402
    %1303 = vmatpush1.msra.mxu0 %v401
    %1304 = vmatprep.subr.mxu0 %v399
    %1305 = vmatpush1.msra.mxu0 %v398
    %1306 = vmatprep.subr.mxu0 %v396
    %1307 = vmatpush1.msra.mxu0 %v395
    %1308 = vmatprep.subr.mxu0 %v393
    %1309 = vmatpush1.msra.mxu0 %v392
    %1310 = vmatprep.subr.mxu0 %v390
    %1311 = vmatpush1.msra.mxu0 %v389
    %1312 = vmatprep.subr.mxu0 0.0
    %1313 = vmatpush2.msra.mxu0 0.0
    %1314 = vmatprep.subr.mxu0 0.0
    %1315 = vmatpush2.msra.mxu0 0.0
    %1316 = vmatprep.subr.mxu0 0.0
    %1317 = vmatpush2.msra.mxu0 0.0
    %1318 = vmatprep.subr.mxu0 0.0
    %1319 = vmatpush2.msra.mxu0 0.0
    %1320 = vmatprep.subr.mxu0 0.0
    %1321 = vmatpush2.msra.mxu0 0.0
    %1322 = vmatprep.subr.mxu0 0.0
    %1323 = vmatpush2.msra.mxu0 0.0
    %1324 = vmatprep.subr.mxu0 0.0
    %1325 = vmatpush2.msra.mxu0 0.0
    %1326 = vmatprep.subr.mxu0 0.0
    %1327 = vmatpush2.msra.mxu0 0.0
    %1328 = vmatprep.subr.mxu0 0.0
    %1329 = vmatpush2.msra.mxu0 0.0
    %1330 = vmatprep.subr.mxu0 0.0
    %1331 = vmatpush2.msra.mxu0 0.0
    %1332 = vmatprep.subr.mxu0 0.0
    %1333 = vmatpush2.msra.mxu0 0.0
    %1334 = vmatprep.subr.mxu0 0.0
    %1335 = vmatpush2.msra.mxu0 0.0
    %1336 = vmatprep.subr.mxu0 0.0
    %1337 = vmatpush2.msra.mxu0 0.0
    %1338 = vmatprep.subr.mxu0 0.0
    %1339 = vmatpush2.msra.mxu0 0.0
    %1340 = vmatprep.subr.mxu0 0.0
    %1341 = vmatpush2.msra.mxu0 0.0
    %1342 = vmatprep.subr.mxu0 0.0
    %1343 = vmatpush2.msra.mxu0 0.0
    %1344 = vmatprep.mubr.f32.mxu0 0.0
    %1345 = vmatmul.mubr.f32.gmra.mxu0 %v1273
    %v1346 = vpop.f32.mrf.mxu0
    %v1347 = vadd.f32 0.0, %v1346
    %v1348 = vpop.f32.mrf.mxu0
    %v1349 = vadd.f32 0.0, %v1348
    %1350 = vdwg.mxu0
    %1351 = vmatprep.subr.mxu0 0.0
    %1352 = vmatpush1.msra.mxu0 %v436
    %1353 = vmatprep.subr.mxu0 0.0
    %1354 = vmatpush1.msra.mxu0 %v433
    %1355 = vmatprep.subr.mxu0 0.0
    %1356 = vmatpush1.msra.mxu0 %v430
    %1357 = vmatprep.subr.mxu0 0.0
    %1358 = vmatpush1.msra.mxu0 %v427
    %1359 = vmatprep.subr.mxu0 0.0
    %1360 = vmatpush1.msra.mxu0 %v424
    %1361 = vmatprep.subr.mxu0 0.0
    %1362 = vmatpush1.msra.mxu0 %v421
    %1363 = vmatprep.subr.mxu0 0.0
    %1364 = vmatpush1.msra.mxu0 %v418
    %1365 = vmatprep.subr.mxu0 0.0
    %1366 = vmatpush1.msra.mxu0 %v415
    %1367 = vmatprep.subr.mxu0 0.0
    %1368 = vmatpush1.msra.mxu0 %v412
    %1369 = vmatprep.subr.mxu0 0.0
    %1370 = vmatpush1.msra.mxu0 %v409
    %1371 = vmatprep.subr.mxu0 0.0
    %1372 = vmatpush1.msra.mxu0 %v406
    %1373 = vmatprep.subr.mxu0 0.0
    %1374 = vmatpush1.msra.mxu0 %v403
    %1375 = vmatprep.subr.mxu0 0.0
    %1376 = vmatpush1.msra.mxu0 %v400
    %1377 = vmatprep.subr.mxu0 0.0
    %1378 = vmatpush1.msra.mxu0 %v397
    %1379 = vmatprep.subr.mxu0 0.0
    %1380 = vmatpush1.msra.mxu0 %v394
    %1381 = vmatprep.subr.mxu0 0.0
    %1382 = vmatpush1.msra.mxu0 %v391
    %1383 = vmatprep.subr.mxu0 0.0
    %1384 = vmatpush2.msra.mxu0 0.0
    %1385 = vmatprep.subr.mxu0 0.0
    %1386 = vmatpush2.msra.mxu0 0.0
    %1387 = vmatprep.subr.mxu0 0.0
    %1388 = vmatpush2.msra.mxu0 0.0
    %1389 = vmatprep.subr.mxu0 0.0
    %1390 = vmatpush2.msra.mxu0 0.0
    %1391 = vmatprep.subr.mxu0 0.0
    %1392 = vmatpush2.msra.mxu0 0.0
    %1393 = vmatprep.subr.mxu0 0.0
    %1394 = vmatpush2.msra.mxu0 0.0
    %1395 = vmatprep.subr.mxu0 0.0
    %1396 = vmatpush2.msra.mxu0 0.0
    %1397 = vmatprep.subr.mxu0 0.0
    %1398 = vmatpush2.msra.mxu0 0.0
    %1399 = vmatprep.subr.mxu0 0.0
    %1400 = vmatpush2.msra.mxu0 0.0
    %1401 = vmatprep.subr.mxu0 0.0
    %1402 = vmatpush2.msra.mxu0 0.0
    %1403 = vmatprep.subr.mxu0 0.0
    %1404 = vmatpush2.msra.mxu0 0.0
    %1405 = vmatprep.subr.mxu0 0.0
    %1406 = vmatpush2.msra.mxu0 0.0
    %1407 = vmatprep.subr.mxu0 0.0
    %1408 = vmatpush2.msra.mxu0 0.0
    %1409 = vmatprep.subr.mxu0 0.0
    %1410 = vmatpush2.msra.mxu0 0.0
    %1411 = vmatprep.subr.mxu0 0.0
    %1412 = vmatpush2.msra.mxu0 0.0
    %1413 = vmatprep.subr.mxu0 0.0
    %1414 = vmatpush2.msra.mxu0 0.0
    %1415 = vmatprep.mubr.f32.mxu0 0.0
    %1416 = vmatmul.mubr.f32.gmra.mxu0 %v1273
    %v1417 = vpop.f32.mrf.mxu0
    %v1418 = vadd.f32 0.0, %v1417
    %v1419 = vpop.f32.mrf.mxu0
    %1420 = vdwg.mxu0
    %v1421 = vadd.f32 %v1277, %v1347
    %v1422 = vxor.u32 %v1421, 2147483648
    %v1423 = vmul.f32 %v1422, 1.442695
    %v1424 = vpow.pop %v1423
    %v1425 = vadd.f32 %v1424, 1.0
    %v1426 = vrcp.pop %v1425
    %v1427 = vmul.f32 1.0, %v1426
    %v1428 = vadd.f32 %v1278, %v1349
    %v1429 = vxor.u32 %v1428, 2147483648
    %v1430 = vmul.f32 %v1429, 1.442695
    %v1431 = vpow.pop %v1430
    %v1432 = vadd.f32 %v1431, 1.0
    %v1433 = vrcp.pop %v1432
    %v1434 = vmul.f32 1.0, %v1433
    %v1435 = vadd.f32 %v1418, %v387
    %v1436 = vmul.f32 %v1427, %v1435
    %v1437 = vadd.f32 %v1279, %v1436
    %v1438 = vtanh.pop %v1437
    %v1439 = vsub.f32 %v1273, %v1438
    %v1440 = vmul.f32 %v1434, %v1439
    %v1441 = vadd.f32 %v1438, %v1440
    %s1442 = scalar_lea.vmem [#allocation10], 40
    %1443 = vst [vmem:[%s1442] sm:$0xff] %v1441
    %s1444 = scalar_lea.vmem [#allocation3], 144
    %v1445 = vld [vmem:[%s1444] sm:$0xff]
    %v1446 = vld [vmem:[%s1444 + $0x8] sm:$0xff]
    %v1447 = vld [vmem:[%s1444 + $0x10] sm:$0xff]
    %1448 = vmatprep.subr.mxu0 %v435
    %1449 = vmatpush1.msra.mxu0 %v434
    %1450 = vmatprep.subr.mxu0 %v432
    %1451 = vmatpush1.msra.mxu0 %v431
    %1452 = vmatprep.subr.mxu0 %v429
    %1453 = vmatpush1.msra.mxu0 %v428
    %1454 = vmatprep.subr.mxu0 %v426
    %1455 = vmatpush1.msra.mxu0 %v425
    %1456 = vmatprep.subr.mxu0 %v423
    %1457 = vmatpush1.msra.mxu0 %v422
    %1458 = vmatprep.subr.mxu0 %v420
    %1459 = vmatpush1.msra.mxu0 %v419
    %1460 = vmatprep.subr.mxu0 %v417
    %1461 = vmatpush1.msra.mxu0 %v416
    %1462 = vmatprep.subr.mxu0 %v414
    %1463 = vmatpush1.msra.mxu0 %v413
    %1464 = vmatprep.subr.mxu0 %v411
    %1465 = vmatpush1.msra.mxu0 %v410
    %1466 = vmatprep.subr.mxu0 %v408
    %1467 = vmatpush1.msra.mxu0 %v407
    %1468 = vmatprep.subr.mxu0 %v405
    %1469 = vmatpush1.msra.mxu0 %v404
    %1470 = vmatprep.subr.mxu0 %v402
    %1471 = vmatpush1.msra.mxu0 %v401
    %1472 = vmatprep.subr.mxu0 %v399
    %1473 = vmatpush1.msra.mxu0 %v398
    %1474 = vmatprep.subr.mxu0 %v396
    %1475 = vmatpush1.msra.mxu0 %v395
    %1476 = vmatprep.subr.mxu0 %v393
    %1477 = vmatpush1.msra.mxu0 %v392
    %1478 = vmatprep.subr.mxu0 %v390
    %1479 = vmatpush1.msra.mxu0 %v389
    %1480 = vmatprep.subr.mxu0 0.0
    %1481 = vmatpush2.msra.mxu0 0.0
    %1482 = vmatprep.subr.mxu0 0.0
    %1483 = vmatpush2.msra.mxu0 0.0
    %1484 = vmatprep.subr.mxu0 0.0
    %1485 = vmatpush2.msra.mxu0 0.0
    %1486 = vmatprep.subr.mxu0 0.0
    %1487 = vmatpush2.msra.mxu0 0.0
    %1488 = vmatprep.subr.mxu0 0.0
    %1489 = vmatpush2.msra.mxu0 0.0
    %1490 = vmatprep.subr.mxu0 0.0
    %1491 = vmatpush2.msra.mxu0 0.0
    %1492 = vmatprep.subr.mxu0 0.0
    %1493 = vmatpush2.msra.mxu0 0.0
    %1494 = vmatprep.subr.mxu0 0.0
    %1495 = vmatpush2.msra.mxu0 0.0
    %1496 = vmatprep.subr.mxu0 0.0
    %1497 = vmatpush2.msra.mxu0 0.0
    %1498 = vmatprep.subr.mxu0 0.0
    %1499 = vmatpush2.msra.mxu0 0.0
    %1500 = vmatprep.subr.mxu0 0.0
    %1501 = vmatpush2.msra.mxu0 0.0
    %1502 = vmatprep.subr.mxu0 0.0
    %1503 = vmatpush2.msra.mxu0 0.0
    %1504 = vmatprep.subr.mxu0 0.0
    %1505 = vmatpush2.msra.mxu0 0.0
    %1506 = vmatprep.subr.mxu0 0.0
    %1507 = vmatpush2.msra.mxu0 0.0
    %1508 = vmatprep.subr.mxu0 0.0
    %1509 = vmatpush2.msra.mxu0 0.0
    %1510 = vmatprep.subr.mxu0 0.0
    %1511 = vmatpush2.msra.mxu0 0.0
    %1512 = vmatprep.mubr.f32.mxu0 0.0
    %1513 = vmatmul.mubr.f32.gmra.mxu0 %v1441
    %v1514 = vpop.f32.mrf.mxu0
    %v1515 = vadd.f32 0.0, %v1514
    %v1516 = vpop.f32.mrf.mxu0
    %v1517 = vadd.f32 0.0, %v1516
    %1518 = vdwg.mxu0
    %1519 = vmatprep.subr.mxu0 0.0
    %1520 = vmatpush1.msra.mxu0 %v436
    %1521 = vmatprep.subr.mxu0 0.0
    %1522 = vmatpush1.msra.mxu0 %v433
    %1523 = vmatprep.subr.mxu0 0.0
    %1524 = vmatpush1.msra.mxu0 %v430
    %1525 = vmatprep.subr.mxu0 0.0
    %1526 = vmatpush1.msra.mxu0 %v427
    %1527 = vmatprep.subr.mxu0 0.0
    %1528 = vmatpush1.msra.mxu0 %v424
    %1529 = vmatprep.subr.mxu0 0.0
    %1530 = vmatpush1.msra.mxu0 %v421
    %1531 = vmatprep.subr.mxu0 0.0
    %1532 = vmatpush1.msra.mxu0 %v418
    %1533 = vmatprep.subr.mxu0 0.0
    %1534 = vmatpush1.msra.mxu0 %v415
    %1535 = vmatprep.subr.mxu0 0.0
    %1536 = vmatpush1.msra.mxu0 %v412
    %1537 = vmatprep.subr.mxu0 0.0
    %1538 = vmatpush1.msra.mxu0 %v409
    %1539 = vmatprep.subr.mxu0 0.0
    %1540 = vmatpush1.msra.mxu0 %v406
    %1541 = vmatprep.subr.mxu0 0.0
    %1542 = vmatpush1.msra.mxu0 %v403
    %1543 = vmatprep.subr.mxu0 0.0
    %1544 = vmatpush1.msra.mxu0 %v400
    %1545 = vmatprep.subr.mxu0 0.0
    %1546 = vmatpush1.msra.mxu0 %v397
    %1547 = vmatprep.subr.mxu0 0.0
    %1548 = vmatpush1.msra.mxu0 %v394
    %1549 = vmatprep.subr.mxu0 0.0
    %1550 = vmatpush1.msra.mxu0 %v391
    %1551 = vmatprep.subr.mxu0 0.0
    %1552 = vmatpush2.msra.mxu0 0.0
    %1553 = vmatprep.subr.mxu0 0.0
    %1554 = vmatpush2.msra.mxu0 0.0
    %1555 = vmatprep.subr.mxu0 0.0
    %1556 = vmatpush2.msra.mxu0 0.0
    %1557 = vmatprep.subr.mxu0 0.0
    %1558 = vmatpush2.msra.mxu0 0.0
    %1559 = vmatprep.subr.mxu0 0.0
    %1560 = vmatpush2.msra.mxu0 0.0
    %1561 = vmatprep.subr.mxu0 0.0
    %1562 = vmatpush2.msra.mxu0 0.0
    %1563 = vmatprep.subr.mxu0 0.0
    %1564 = vmatpush2.msra.mxu0 0.0
    %1565 = vmatprep.subr.mxu0 0.0
    %1566 = vmatpush2.msra.mxu0 0.0
    %1567 = vmatprep.subr.mxu0 0.0
    %1568 = vmatpush2.msra.mxu0 0.0
    %1569 = vmatprep.subr.mxu0 0.0
    %1570 = vmatpush2.msra.mxu0 0.0
    %1571 = vmatprep.subr.mxu0 0.0
    %1572 = vmatpush2.msra.mxu0 0.0
    %1573 = vmatprep.subr.mxu0 0.0
    %1574 = vmatpush2.msra.mxu0 0.0
    %1575 = vmatprep.subr.mxu0 0.0
    %1576 = vmatpush2.msra.mxu0 0.0
    %1577 = vmatprep.subr.mxu0 0.0
    %1578 = vmatpush2.msra.mxu0 0.0
    %1579 = vmatprep.subr.mxu0 0.0
    %1580 = vmatpush2.msra.mxu0 0.0
    %1581 = vmatprep.subr.mxu0 0.0
    %1582 = vmatpush2.msra.mxu0 0.0
    %1583 = vmatprep.mubr.f32.mxu0 0.0
    %1584 = vmatmul.mubr.f32.gmra.mxu0 %v1441
    %v1585 = vpop.f32.mrf.mxu0
    %v1586 = vadd.f32 0.0, %v1585
    %v1587 = vpop.f32.mrf.mxu0
    %1588 = vdwg.mxu0
    %v1589 = vadd.f32 %v1445, %v1515
    %v1590 = vxor.u32 %v1589, 2147483648
    %v1591 = vmul.f32 %v1590, 1.442695
    %v1592 = vpow.pop %v1591
    %v1593 = vadd.f32 %v1592, 1.0
    %v1594 = vrcp.pop %v1593
    %v1595 = vmul.f32 1.0, %v1594
    %v1596 = vadd.f32 %v1446, %v1517
    %v1597 = vxor.u32 %v1596, 2147483648
    %v1598 = vmul.f32 %v1597, 1.442695
    %v1599 = vpow.pop %v1598
    %v1600 = vadd.f32 %v1599, 1.0
    %v1601 = vrcp.pop %v1600
    %v1602 = vmul.f32 1.0, %v1601
    %v1603 = vadd.f32 %v1586, %v387
    %v1604 = vmul.f32 %v1595, %v1603
    %v1605 = vadd.f32 %v1447, %v1604
    %v1606 = vtanh.pop %v1605
    %v1607 = vsub.f32 %v1441, %v1606
    %v1608 = vmul.f32 %v1602, %v1607
    %v1609 = vadd.f32 %v1606, %v1608
    %s1610 = scalar_lea.vmem [#allocation10], 48
    %1611 = vst [vmem:[%s1610] sm:$0xff] %v1609
    %s1612 = scalar_lea.vmem [#allocation3], 168
    %v1613 = vld [vmem:[%s1612] sm:$0xff]
    %v1614 = vld [vmem:[%s1612 + $0x8] sm:$0xff]
    %v1615 = vld [vmem:[%s1612 + $0x10] sm:$0xff]
    %1616 = vmatprep.subr.mxu0 %v435
    %1617 = vmatpush1.msra.mxu0 %v434
    %1618 = vmatprep.subr.mxu0 %v432
    %1619 = vmatpush1.msra.mxu0 %v431
    %1620 = vmatprep.subr.mxu0 %v429
    %1621 = vmatpush1.msra.mxu0 %v428
    %1622 = vmatprep.subr.mxu0 %v426
    %1623 = vmatpush1.msra.mxu0 %v425
    %1624 = vmatprep.subr.mxu0 %v423
    %1625 = vmatpush1.msra.mxu0 %v422
    %1626 = vmatprep.subr.mxu0 %v420
    %1627 = vmatpush1.msra.mxu0 %v419
    %1628 = vmatprep.subr.mxu0 %v417
    %1629 = vmatpush1.msra.mxu0 %v416
    %1630 = vmatprep.subr.mxu0 %v414
    %1631 = vmatpush1.msra.mxu0 %v413
    %1632 = vmatprep.subr.mxu0 %v411
    %1633 = vmatpush1.msra.mxu0 %v410
    %1634 = vmatprep.subr.mxu0 %v408
    %1635 = vmatpush1.msra.mxu0 %v407
    %1636 = vmatprep.subr.mxu0 %v405
    %1637 = vmatpush1.msra.mxu0 %v404
    %1638 = vmatprep.subr.mxu0 %v402
    %1639 = vmatpush1.msra.mxu0 %v401
    %1640 = vmatprep.subr.mxu0 %v399
    %1641 = vmatpush1.msra.mxu0 %v398
    %1642 = vmatprep.subr.mxu0 %v396
    %1643 = vmatpush1.msra.mxu0 %v395
    %1644 = vmatprep.subr.mxu0 %v393
    %1645 = vmatpush1.msra.mxu0 %v392
    %1646 = vmatprep.subr.mxu0 %v390
    %1647 = vmatpush1.msra.mxu0 %v389
    %1648 = vmatprep.subr.mxu0 0.0
    %1649 = vmatpush2.msra.mxu0 0.0
    %1650 = vmatprep.subr.mxu0 0.0
    %1651 = vmatpush2.msra.mxu0 0.0
    %1652 = vmatprep.subr.mxu0 0.0
    %1653 = vmatpush2.msra.mxu0 0.0
    %1654 = vmatprep.subr.mxu0 0.0
    %1655 = vmatpush2.msra.mxu0 0.0
    %1656 = vmatprep.subr.mxu0 0.0
    %1657 = vmatpush2.msra.mxu0 0.0
    %1658 = vmatprep.subr.mxu0 0.0
    %1659 = vmatpush2.msra.mxu0 0.0
    %1660 = vmatprep.subr.mxu0 0.0
    %1661 = vmatpush2.msra.mxu0 0.0
    %1662 = vmatprep.subr.mxu0 0.0
    %1663 = vmatpush2.msra.mxu0 0.0
    %1664 = vmatprep.subr.mxu0 0.0
    %1665 = vmatpush2.msra.mxu0 0.0
    %1666 = vmatprep.subr.mxu0 0.0
    %1667 = vmatpush2.msra.mxu0 0.0
    %1668 = vmatprep.subr.mxu0 0.0
    %1669 = vmatpush2.msra.mxu0 0.0
    %1670 = vmatprep.subr.mxu0 0.0
    %1671 = vmatpush2.msra.mxu0 0.0
    %1672 = vmatprep.subr.mxu0 0.0
    %1673 = vmatpush2.msra.mxu0 0.0
    %1674 = vmatprep.subr.mxu0 0.0
    %1675 = vmatpush2.msra.mxu0 0.0
    %1676 = vmatprep.subr.mxu0 0.0
    %1677 = vmatpush2.msra.mxu0 0.0
    %1678 = vmatprep.subr.mxu0 0.0
    %1679 = vmatpush2.msra.mxu0 0.0
    %1680 = vmatprep.mubr.f32.mxu0 0.0
    %1681 = vmatmul.mubr.f32.gmra.mxu0 %v1609
    %v1682 = vpop.f32.mrf.mxu0
    %v1683 = vadd.f32 0.0, %v1682
    %v1684 = vpop.f32.mrf.mxu0
    %v1685 = vadd.f32 0.0, %v1684
    %1686 = vdwg.mxu0
    %1687 = vmatprep.subr.mxu0 0.0
    %1688 = vmatpush1.msra.mxu0 %v436
    %1689 = vmatprep.subr.mxu0 0.0
    %1690 = vmatpush1.msra.mxu0 %v433
    %1691 = vmatprep.subr.mxu0 0.0
    %1692 = vmatpush1.msra.mxu0 %v430
    %1693 = vmatprep.subr.mxu0 0.0
    %1694 = vmatpush1.msra.mxu0 %v427
    %1695 = vmatprep.subr.mxu0 0.0
    %1696 = vmatpush1.msra.mxu0 %v424
    %1697 = vmatprep.subr.mxu0 0.0
    %1698 = vmatpush1.msra.mxu0 %v421
    %1699 = vmatprep.subr.mxu0 0.0
    %1700 = vmatpush1.msra.mxu0 %v418
    %1701 = vmatprep.subr.mxu0 0.0
    %1702 = vmatpush1.msra.mxu0 %v415
    %1703 = vmatprep.subr.mxu0 0.0
    %1704 = vmatpush1.msra.mxu0 %v412
    %1705 = vmatprep.subr.mxu0 0.0
    %1706 = vmatpush1.msra.mxu0 %v409
    %1707 = vmatprep.subr.mxu0 0.0
    %1708 = vmatpush1.msra.mxu0 %v406
    %1709 = vmatprep.subr.mxu0 0.0
    %1710 = vmatpush1.msra.mxu0 %v403
    %1711 = vmatprep.subr.mxu0 0.0
    %1712 = vmatpush1.msra.mxu0 %v400
    %1713 = vmatprep.subr.mxu0 0.0
    %1714 = vmatpush1.msra.mxu0 %v397
    %1715 = vmatprep.subr.mxu0 0.0
    %1716 = vmatpush1.msra.mxu0 %v394
    %1717 = vmatprep.subr.mxu0 0.0
    %1718 = vmatpush1.msra.mxu0 %v391
    %1719 = vmatprep.subr.mxu0 0.0
    %1720 = vmatpush2.msra.mxu0 0.0
    %1721 = vmatprep.subr.mxu0 0.0
    %1722 = vmatpush2.msra.mxu0 0.0
    %1723 = vmatprep.subr.mxu0 0.0
    %1724 = vmatpush2.msra.mxu0 0.0
    %1725 = vmatprep.subr.mxu0 0.0
    %1726 = vmatpush2.msra.mxu0 0.0
    %1727 = vmatprep.subr.mxu0 0.0
    %1728 = vmatpush2.msra.mxu0 0.0
    %1729 = vmatprep.subr.mxu0 0.0
    %1730 = vmatpush2.msra.mxu0 0.0
    %1731 = vmatprep.subr.mxu0 0.0
    %1732 = vmatpush2.msra.mxu0 0.0
    %1733 = vmatprep.subr.mxu0 0.0
    %1734 = vmatpush2.msra.mxu0 0.0
    %1735 = vmatprep.subr.mxu0 0.0
    %1736 = vmatpush2.msra.mxu0 0.0
    %1737 = vmatprep.subr.mxu0 0.0
    %1738 = vmatpush2.msra.mxu0 0.0
    %1739 = vmatprep.subr.mxu0 0.0
    %1740 = vmatpush2.msra.mxu0 0.0
    %1741 = vmatprep.subr.mxu0 0.0
    %1742 = vmatpush2.msra.mxu0 0.0
    %1743 = vmatprep.subr.mxu0 0.0
    %1744 = vmatpush2.msra.mxu0 0.0
    %1745 = vmatprep.subr.mxu0 0.0
    %1746 = vmatpush2.msra.mxu0 0.0
    %1747 = vmatprep.subr.mxu0 0.0
    %1748 = vmatpush2.msra.mxu0 0.0
    %1749 = vmatprep.subr.mxu0 0.0
    %1750 = vmatpush2.msra.mxu0 0.0
    %1751 = vmatprep.mubr.f32.mxu0 0.0
    %1752 = vmatmul.mubr.f32.gmra.mxu0 %v1609
    %v1753 = vpop.f32.mrf.mxu0
    %v1754 = vadd.f32 0.0, %v1753
    %v1755 = vpop.f32.mrf.mxu0
    %1756 = vdwg.mxu0
    %v1757 = vadd.f32 %v1613, %v1683
    %v1758 = vxor.u32 %v1757, 2147483648
    %v1759 = vmul.f32 %v1758, 1.442695
    %v1760 = vpow.pop %v1759
    %v1761 = vadd.f32 %v1760, 1.0
    %v1762 = vrcp.pop %v1761
    %v1763 = vmul.f32 1.0, %v1762
    %v1764 = vadd.f32 %v1614, %v1685
    %v1765 = vxor.u32 %v1764, 2147483648
    %v1766 = vmul.f32 %v1765, 1.442695
    %v1767 = vpow.pop %v1766
    %v1768 = vadd.f32 %v1767, 1.0
    %v1769 = vrcp.pop %v1768
    %v1770 = vmul.f32 1.0, %v1769
    %v1771 = vadd.f32 %v1754, %v387
    %v1772 = vmul.f32 %v1763, %v1771
    %v1773 = vadd.f32 %v1615, %v1772
    %v1774 = vtanh.pop %v1773
    %v1775 = vsub.f32 %v1609, %v1774
    %v1776 = vmul.f32 %v1770, %v1775
    %v1777 = vadd.f32 %v1774, %v1776
    %s1778 = scalar_lea.vmem [#allocation10], 56
    %1779 = vst [vmem:[%s1778] sm:$0xff] %v1777
    %1780 = vst [vmem:[#allocation2] sm:$0xff] %v1777
    // Predicated region
    $region38: #{tpu_custom_call.1} parent=1 // pred_check
      _
    $region39: #{tpu_custom_call.1} parent=1 // pred_check_branch
      %1782 = sbr.rel (0) target = $region41
    $region40: #{tpu_custom_call.1} parent=1 // pred_region
      %s1784 = ssub.s32 1024, 1024
      %1785 = vsyncadd [#allocation6], %s1784
      %s1786 = sshll.u32 [#allocation10], 4
      %s1787 = int_to_ptr.vmem [resolvable:$true] %s1786
      %1792 = dma.vmem_to_hbm [thread:$0]  %s1787, 1024, %s5, [#allocation6], 128, 128, 8
    $region41: #{tpu_custom_call.1} parent=1 // pred_fallthru
      _
    // Predicated region
    $region42: #{tpu_custom_call.1} parent=1 // pred_check
      _
    $region43: #{tpu_custom_call.1} parent=1 // pred_check_branch
      %1794 = sbr.rel (0) target = $region45
    $region44: #{tpu_custom_call.1} parent=1 // pred_region
      %1795 = dma.done [#allocation6], 1024
    $region45: #{tpu_custom_call.1} parent=1 // pred_fallthru
      _
    %1796 = vsyncpa [#allocation5], 1
    %1797 = vsyncpa [#allocation8], 1
    %1798 = vsyncpa [#allocation6], 1

</llo_original>
